<compile_context>
chip_gen: v7x
topology: tpu7x:2x2x1
jax: 0.10.0
libtpu: 0.0.40
codegen_flags: <defaults>
</compile_context>

<pallas_src>
import math

import jax
import jax.numpy as jnp
import numpy as np
from jax.experimental import pallas as pl
from jax.experimental.pallas import tpu as pltpu

NEG_SLOPE = 0.2
INV_SQRT2 = 1.0 / math.sqrt(2.0)


def _leaky_relu(t):
    return jnp.where(t > 0, t, NEG_SLOPE * t)


def down_block_kernel(x_ref, w1_ref, b1_ref, w2_ref, b2_ref, wsc_ref,
                      o_ref, xpad, hpad):
    """Fused DownBlock forward for one sample.

    x_ref : (H, W2, 2*Cin)  f32, column-pair packed NHWC input
    w1_ref: (12*Cin, Cin)   bf16, conv1 taps pre-combined with horizontal pool
    w2_ref: (9*Cin, Cout)   bf16, conv2 im2col weights
    wsc_ref: (Cin, Cout)    bf16, 1x1 shortcut weights
    o_ref : (H2*W2, Cout)   f32
    xpad  : (H+2, W2+2, 2*Cin) bf16 scratch (zero halo for stage 1)
    hpad  : (H2+2, W2+2, Cin)  bf16 scratch (zero halo for stage 2)
    """
    H, W2, C2 = x_ref.shape
    Cin = C2 // 2
    H2 = H // 2
    Cout = o_ref.shape[-1]

    xv = x_ref[...]                                   # resident full-res input (f32)

    # ---- Shortcut: residual = avg_pool2(sc(x)) == sc(avg_pool2(x)) (1x1 conv is
    # pointwise-linear so it commutes with average pooling).
    hp = xv[:, :, :Cin] + xv[:, :, Cin:]              # horizontal pair sums (lane halves)
    hp4 = hp.reshape(H2, 2, W2, Cin)                  # leading-dim split (free)
    px = 0.25 * (hp4[:, 0] + hp4[:, 1])               # (H2, W2, Cin) pooled x
    res = jnp.dot(px.reshape(H2 * W2, Cin).astype(jnp.bfloat16), wsc_ref[...],
                  preferred_element_type=jnp.float32)  # (H2*W2, Cout)

    # ---- Stage 1: h = leaky_relu(avg_pool2(conv1(leaky_relu(x)) + b1))
    # conv1 + horizontal pooling fused into a stride-2 3x4 conv (weights pre-
    # combined in the wrapper), expressed as ONE im2col matmul with K = 12*Cin.
    a = _leaky_relu(xv).astype(jnp.bfloat16)
    xpad[...] = jnp.zeros(xpad.shape, xpad.dtype)
    xpad[1:H + 1, 1:W2 + 1, :] = a
    ap = xpad[...]                                    # (H+2, W2+2, 2*Cin) bf16, zero halo

    # horizontal tap u = 0..3  ->  (pair-column offset, lane-half offset)
    u_slices = ((0, Cin), (1, 0), (1, Cin), (2, 0))
    taps = []
    for dy in range(3):
        for (js, lo) in u_slices:
            taps.append(ap[dy:dy + H, js:js + W2, lo:lo + Cin].reshape(H * W2, Cin))
    patches1 = jnp.concatenate(taps, axis=1)          # (H*W2, 12*Cin)
    hsum = jnp.dot(patches1, w1_ref[...],
                   preferred_element_type=jnp.float32)  # horizontal pair-sums of conv1
    hs4 = hsum.reshape(H2, 2, W2, Cin)
    pooled = 0.25 * (hs4[:, 0] + hs4[:, 1])           # vertical pool -> (H2, W2, Cin)
    h_act = _leaky_relu(pooled.reshape(H2 * W2, Cin) + b1_ref[...])

    # ---- Stage 2: out = conv2(h) + b2  (3x3 same conv, single im2col matmul)
    hpad[...] = jnp.zeros(hpad.shape, hpad.dtype)
    hpad[1:H2 + 1, 1:W2 + 1, :] = h_act.reshape(H2, W2, Cin).astype(jnp.bfloat16)
    hv = hpad[...]                                    # (H2+2, W2+2, Cin) bf16, zero halo
    taps2 = []
    for dy in range(3):
        for dx in range(3):
            taps2.append(hv[dy:dy + H2, dx:dx + W2, :].reshape(H2 * W2, Cin))
    patches2 = jnp.concatenate(taps2, axis=1)         # (H2*W2, 9*Cin)
    out = jnp.dot(patches2, w2_ref[...],
                  preferred_element_type=jnp.float32) + b2_ref[...]

    # ---- Residual add + 1/sqrt(2) scaling (f32).
    o_ref[...] = (out + res) * INV_SQRT2


def down_block(x_nchw, w1, b1, w2, b2, wsc):
    """Pallas implementation of DownBlock.forward. x_nchw: (N, Cin, H, W)."""
    N, Cin, H, W = x_nchw.shape
    Cout = w2.shape[0]
    H2, W2 = H // 2, W // 2

    # --- layout glue (free reshapes + one NCHW<->NHWC transpose) ---
    x = jnp.transpose(x_nchw, (0, 2, 3, 1)).astype(jnp.float32)        # NHWC
    x2 = x.reshape(N, H, W2, 2 * Cin)        # pack adjacent column pairs on lanes (free)

    # conv1 weights: OIHW -> (dy, dx, ci, co), then fold the horizontal 2-tap
    # average into the kernel: W1h[dy, u] = W1[dy, u] + W1[dy, u-1]  (u = 0..3).
    w1k = jnp.transpose(w1, (2, 3, 1, 0)).astype(jnp.float32)          # (3,3,Cin,Cin)
    w1h = jnp.zeros((3, 4, Cin, Cin), jnp.float32)
    w1h = w1h.at[:, 0:3].add(w1k)
    w1h = w1h.at[:, 1:4].add(w1k)
    w1h_flat = w1h.reshape(12 * Cin, Cin).astype(jnp.bfloat16)

    w2_flat = jnp.transpose(w2, (2, 3, 1, 0)).reshape(9 * Cin, Cout).astype(jnp.bfloat16)
    wsck = jnp.transpose(wsc[:, :, 0, 0], (1, 0)).astype(jnp.bfloat16)  # (Cin, Cout)
    b1k = b1.reshape(1, Cin).astype(jnp.float32)
    b2k = b2.reshape(1, Cout).astype(jnp.float32)

    out_flat = pl.pallas_call(
        down_block_kernel,
        out_shape=jax.ShapeDtypeStruct((N, H2 * W2, Cout), jnp.float32),
        grid=(N,),
        in_specs=[
            pl.BlockSpec((None, H, W2, 2 * Cin), lambda n: (n, 0, 0, 0)),
            pl.BlockSpec((12 * Cin, Cin), lambda n: (0, 0)),   # resident weights
            pl.BlockSpec((1, Cin), lambda n: (0, 0)),
            pl.BlockSpec((9 * Cin, Cout), lambda n: (0, 0)),
            pl.BlockSpec((1, Cout), lambda n: (0, 0)),
            pl.BlockSpec((Cin, Cout), lambda n: (0, 0)),
        ],
        out_specs=pl.BlockSpec((None, H2 * W2, Cout), lambda n: (n, 0, 0)),
        scratch_shapes=[
            pltpu.VMEM((H + 2, W2 + 2, 2 * Cin), jnp.bfloat16),
            pltpu.VMEM((H2 + 2, W2 + 2, Cin), jnp.bfloat16),
        ],
        compiler_params=pltpu.CompilerParams(dimension_semantics=("parallel",)),
    )(x2, w1h_flat, b1k, w2_flat, b2k, wsck)

    out = out_flat.reshape(N, H2, W2, Cout)                            # free
    return jnp.transpose(out, (0, 3, 1, 2))                            # back to NCHW


def ref_down_block(x, w1, b1, w2, b2, wsc):
    """Pure-JAX f32 reference mirroring the PyTorch forward (NCHW)."""
    lrelu = lambda t: jnp.where(t > 0, t, NEG_SLOPE * t)

    def conv(t, w, b=None, pad=0):
        y = jax.lax.conv_general_dilated(
            t, w, (1, 1), [(pad, pad), (pad, pad)],
            dimension_numbers=("NCHW", "OIHW", "NCHW"),
            precision=jax.lax.Precision.HIGHEST)
        if b is not None:
            y = y + b[None, :, None, None]
        return y

    def pool(t):
        return 0.25 * (t[:, :, 0::2, 0::2] + t[:, :, 0::2, 1::2]
                       + t[:, :, 1::2, 0::2] + t[:, :, 1::2, 1::2])

    residual = pool(conv(x, wsc, None, 0))
    out = conv(lrelu(pool(conv(lrelu(x), w1, b1, 1))), w2, b2, 1)
    return (residual + out) / math.sqrt(2.0)


if __name__ == "__main__":
    N, Cin, Cout, H, W = 2, 4, 8, 16, 16
    key = jax.random.PRNGKey(0)
    k0, k1, k2, k3, k4, k5 = jax.random.split(key, 6)

    x = jax.random.normal(k0, (N, Cin, H, W), jnp.float32)
    # Deterministic synthetic parameters (shapes from nn.Conv2d in __init__).
    w1 = jax.random.normal(k1, (Cin, Cin, 3, 3), jnp.float32) * 0.2
    b1 = jax.random.normal(k2, (Cin,), jnp.float32) * 0.1
    w2 = jax.random.normal(k3, (Cout, Cin, 3, 3), jnp.float32) * 0.2
    b2 = jax.random.normal(k4, (Cout,), jnp.float32) * 0.1
    wsc = jax.random.normal(k5, (Cout, Cin, 1, 1), jnp.float32) * 0.2

    out = jax.block_until_ready(down_block(x, w1, b1, w2, b2, wsc))
    ref = jax.block_until_ready(ref_down_block(x, w1, b1, w2, b2, wsc))

    assert out.shape == (N, Cout, H // 2, W // 2), out.shape
    # bf16 matmuls (f32 accumulation) vs an f32 reference -> ~1e-2 tolerance.
    np.testing.assert_allclose(np.asarray(out), np.asarray(ref),
                               rtol=2e-2, atol=2e-2)
    print("KERNEL_OK")
</pallas_src>

<mosaic_0001>
module attributes {stable_mosaic.version = 11 : i64} {
  func.func @down_block_kernel(%arg0: i32, %arg1: memref<1x16x8x8xf32, #tpu.memory_space<vmem>>, %arg2: memref<48x4xbf16, #tpu.memory_space<vmem>>, %arg3: memref<1x4xf32, #tpu.memory_space<vmem>>, %arg4: memref<36x8xbf16, #tpu.memory_space<vmem>>, %arg5: memref<1x8xf32, #tpu.memory_space<vmem>>, %arg6: memref<4x8xbf16, #tpu.memory_space<vmem>>, %arg7: memref<1x64x8xf32, #tpu.memory_space<vmem>>, %arg8: memref<18x10x8xbf16, #tpu.memory_space<vmem>>, %arg9: memref<10x10x4xbf16, #tpu.memory_space<vmem>>) attributes {dimension_semantics = [#tpu.dimension_semantics<parallel>], iteration_bounds = array<i64: 2>, scalar_prefetch = 0 : i64, scratch_operands = 2 : i64, tpu.core_type = #tpu.core_type<tc>, window_params = [{transform_indices = @transform_0, window_bounds = array<i64: 1, 16, 8, 8>}, {pipeline_mode = #tpu.pipeline_mode<synchronous>, transform_indices = @transform_1, window_bounds = array<i64: 48, 4>}, {pipeline_mode = #tpu.pipeline_mode<synchronous>, transform_indices = @transform_2, window_bounds = array<i64: 1, 4>}, {pipeline_mode = #tpu.pipeline_mode<synchronous>, transform_indices = @transform_3, window_bounds = array<i64: 36, 8>}, {pipeline_mode = #tpu.pipeline_mode<synchronous>, transform_indices = @transform_4, window_bounds = array<i64: 1, 8>}, {pipeline_mode = #tpu.pipeline_mode<synchronous>, transform_indices = @transform_5, window_bounds = array<i64: 4, 8>}, {transform_indices = @transform_6, window_bounds = array<i64: 1, 64, 8>}]} {
    %c0 = arith.constant 0 : index
    %c0_0 = arith.constant 0 : index
    %c0_1 = arith.constant 0 : index
    %c0_2 = arith.constant 0 : index
    %0 = vector.load %arg1[%c0, %c0_0, %c0_1, %c0_2] : memref<1x16x8x8xf32, #tpu.memory_space<vmem>>, vector<1x16x8x8xf32>
    %1 = vector.shape_cast %0 : vector<1x16x8x8xf32> to vector<16x8x8xf32>
    %2 = vector.extract_strided_slice %1 {offsets = [0, 0, 0], sizes = [16, 8, 4], strides = [1, 1, 1]} : vector<16x8x8xf32> to vector<16x8x4xf32>
    %3 = vector.extract_strided_slice %1 {offsets = [0, 0, 4], sizes = [16, 8, 4], strides = [1, 1, 1]} : vector<16x8x8xf32> to vector<16x8x4xf32>
    %4 = arith.addf %2, %3 : vector<16x8x4xf32>
    %5 = vector.shape_cast %4 : vector<16x8x4xf32> to vector<8x2x8x4xf32>
    %6 = vector.extract_strided_slice %5 {offsets = [0, 0, 0, 0], sizes = [8, 1, 8, 4], strides = [1, 1, 1, 1]} : vector<8x2x8x4xf32> to vector<8x1x8x4xf32>
    %7 = vector.shape_cast %6 : vector<8x1x8x4xf32> to vector<8x8x4xf32>
    %8 = vector.extract_strided_slice %5 {offsets = [0, 1, 0, 0], sizes = [8, 1, 8, 4], strides = [1, 1, 1, 1]} : vector<8x2x8x4xf32> to vector<8x1x8x4xf32>
    %9 = vector.shape_cast %8 : vector<8x1x8x4xf32> to vector<8x8x4xf32>
    %10 = arith.addf %7, %9 : vector<8x8x4xf32>
    %cst = arith.constant 2.500000e-01 : f32
    %11 = vector.broadcast %cst : f32 to vector<8x8x4xf32>
    %12 = arith.mulf %11, %10 : vector<8x8x4xf32>
    %13 = vector.shape_cast %12 : vector<8x8x4xf32> to vector<64x4xf32>
    %14 = arith.truncf %13 : vector<64x4xf32> to vector<64x4xbf16>
    %c0_3 = arith.constant 0 : index
    %c0_4 = arith.constant 0 : index
    %15 = vector.load %arg6[%c0_3, %c0_4] : memref<4x8xbf16, #tpu.memory_space<vmem>>, vector<4x8xbf16>
    %cst_5 = arith.constant dense<0.000000e+00> : vector<64x8xf32>
    %16 = tpu.matmul %14, %15, %cst_5 {dimension_numbers = #tpu.dot_dimension_numbers<[1], [0], [0], [1], [0, 0, 1, 1], [], []>} : vector<64x4xbf16>, vector<4x8xbf16>, vector<64x8xf32> -> vector<64x8xf32>
    %cst_6 = arith.constant 0.000000e+00 : f32
    %17 = vector.broadcast %cst_6 : f32 to vector<16x8x8xf32>
    %18 = arith.cmpf ogt, %1, %17 : vector<16x8x8xf32>
    %cst_7 = arith.constant 2.000000e-01 : f32
    %19 = vector.broadcast %cst_7 : f32 to vector<16x8x8xf32>
    %20 = arith.mulf %19, %1 : vector<16x8x8xf32>
    %21 = arith.select %18, %1, %20 : vector<16x8x8xi1>, vector<16x8x8xf32>
    %22 = arith.truncf %21 : vector<16x8x8xf32> to vector<16x8x8xbf16>
    %cst_8 = arith.constant 0.000000e+00 : bf16
    %23 = vector.broadcast %cst_8 : bf16 to vector<18x10x8xbf16>
    %c0_9 = arith.constant 0 : index
    %c0_10 = arith.constant 0 : index
    %c0_11 = arith.constant 0 : index
    %24 = vector.load %arg8[%c0_9, %c0_10, %c0_11] : memref<18x10x8xbf16, #tpu.memory_space<vmem>>, vector<18x10x8xbf16>
    tpu.vector_store %arg8[%c0_9, %c0_10, %c0_11], %23 {strides = array<i32>} : memref<18x10x8xbf16, #tpu.memory_space<vmem>>, vector<18x10x8xbf16>,
    %c1 = arith.constant 1 : index
    %c1_12 = arith.constant 1 : index
    %c0_13 = arith.constant 0 : index
    %25 = vector.load %arg8[%c1, %c1_12, %c0_13] : memref<18x10x8xbf16, #tpu.memory_space<vmem>>, vector<16x8x8xbf16>
    tpu.vector_store %arg8[%c1, %c1_12, %c0_13], %22 {strides = array<i32>} : memref<18x10x8xbf16, #tpu.memory_space<vmem>>, vector<16x8x8xbf16>,
    %c0_14 = arith.constant 0 : index
    %c0_15 = arith.constant 0 : index
    %c0_16 = arith.constant 0 : index
    %26 = vector.load %arg8[%c0_14, %c0_15, %c0_16] : memref<18x10x8xbf16, #tpu.memory_space<vmem>>, vector<18x10x8xbf16>
    %27 = vector.extract_strided_slice %26 {offsets = [0, 0, 4], sizes = [16, 8, 4], strides = [1, 1, 1]} : vector<18x10x8xbf16> to vector<16x8x4xbf16>
    %28 = vector.shape_cast %27 : vector<16x8x4xbf16> to vector<128x4xbf16>
    %29 = vector.extract_strided_slice %26 {offsets = [0, 1, 0], sizes = [16, 8, 4], strides = [1, 1, 1]} : vector<18x10x8xbf16> to vector<16x8x4xbf16>
    %30 = vector.shape_cast %29 : vector<16x8x4xbf16> to vector<128x4xbf16>
    %31 = vector.extract_strided_slice %26 {offsets = [0, 1, 4], sizes = [16, 8, 4], strides = [1, 1, 1]} : vector<18x10x8xbf16> to vector<16x8x4xbf16>
    %32 = vector.shape_cast %31 : vector<16x8x4xbf16> to vector<128x4xbf16>
    %33 = vector.extract_strided_slice %26 {offsets = [0, 2, 0], sizes = [16, 8, 4], strides = [1, 1, 1]} : vector<18x10x8xbf16> to vector<16x8x4xbf16>
    %34 = vector.shape_cast %33 : vector<16x8x4xbf16> to vector<128x4xbf16>
    %35 = vector.extract_strided_slice %26 {offsets = [1, 0, 4], sizes = [16, 8, 4], strides = [1, 1, 1]} : vector<18x10x8xbf16> to vector<16x8x4xbf16>
    %36 = vector.shape_cast %35 : vector<16x8x4xbf16> to vector<128x4xbf16>
    %37 = vector.extract_strided_slice %26 {offsets = [1, 1, 0], sizes = [16, 8, 4], strides = [1, 1, 1]} : vector<18x10x8xbf16> to vector<16x8x4xbf16>
    %38 = vector.shape_cast %37 : vector<16x8x4xbf16> to vector<128x4xbf16>
    %39 = vector.extract_strided_slice %26 {offsets = [1, 1, 4], sizes = [16, 8, 4], strides = [1, 1, 1]} : vector<18x10x8xbf16> to vector<16x8x4xbf16>
    %40 = vector.shape_cast %39 : vector<16x8x4xbf16> to vector<128x4xbf16>
    %41 = vector.extract_strided_slice %26 {offsets = [1, 2, 0], sizes = [16, 8, 4], strides = [1, 1, 1]} : vector<18x10x8xbf16> to vector<16x8x4xbf16>
    %42 = vector.shape_cast %41 : vector<16x8x4xbf16> to vector<128x4xbf16>
    %43 = vector.extract_strided_slice %26 {offsets = [2, 0, 4], sizes = [16, 8, 4], strides = [1, 1, 1]} : vector<18x10x8xbf16> to vector<16x8x4xbf16>
    %44 = vector.shape_cast %43 : vector<16x8x4xbf16> to vector<128x4xbf16>
    %45 = vector.extract_strided_slice %26 {offsets = [2, 1, 0], sizes = [16, 8, 4], strides = [1, 1, 1]} : vector<18x10x8xbf16> to vector<16x8x4xbf16>
    %46 = vector.shape_cast %45 : vector<16x8x4xbf16> to vector<128x4xbf16>
    %47 = vector.extract_strided_slice %26 {offsets = [2, 1, 4], sizes = [16, 8, 4], strides = [1, 1, 1]} : vector<18x10x8xbf16> to vector<16x8x4xbf16>
    %48 = vector.shape_cast %47 : vector<16x8x4xbf16> to vector<128x4xbf16>
    %49 = vector.extract_strided_slice %26 {offsets = [2, 2, 0], sizes = [16, 8, 4], strides = [1, 1, 1]} : vector<18x10x8xbf16> to vector<16x8x4xbf16>
    %50 = vector.shape_cast %49 : vector<16x8x4xbf16> to vector<128x4xbf16>
    %51 = tpu.concatenate %28, %30, %32, %34, %36, %38, %40, %42, %44, %46, %48, %50 in 1 : vector<128x4xbf16>, vector<128x4xbf16>, vector<128x4xbf16>, vector<128x4xbf16>, vector<128x4xbf16>, vector<128x4xbf16>, vector<128x4xbf16>, vector<128x4xbf16>, vector<128x4xbf16>, vector<128x4xbf16>, vector<128x4xbf16>, vector<128x4xbf16> -> vector<128x48xbf16>
    %c0_17 = arith.constant 0 : index
    %c0_18 = arith.constant 0 : index
    %52 = vector.load %arg2[%c0_17, %c0_18] : memref<48x4xbf16, #tpu.memory_space<vmem>>, vector<48x4xbf16>
    %cst_19 = arith.constant dense<0.000000e+00> : vector<128x4xf32>
    %53 = tpu.matmul %51, %52, %cst_19 {dimension_numbers = #tpu.dot_dimension_numbers<[1], [0], [0], [1], [0, 0, 1, 1], [], []>} : vector<128x48xbf16>, vector<48x4xbf16>, vector<128x4xf32> -> vector<128x4xf32>
    %54 = vector.shape_cast %53 : vector<128x4xf32> to vector<8x2x8x4xf32>
    %55 = vector.extract_strided_slice %54 {offsets = [0, 0, 0, 0], sizes = [8, 1, 8, 4], strides = [1, 1, 1, 1]} : vector<8x2x8x4xf32> to vector<8x1x8x4xf32>
    %56 = vector.shape_cast %55 : vector<8x1x8x4xf32> to vector<8x8x4xf32>
    %57 = vector.extract_strided_slice %54 {offsets = [0, 1, 0, 0], sizes = [8, 1, 8, 4], strides = [1, 1, 1, 1]} : vector<8x2x8x4xf32> to vector<8x1x8x4xf32>
    %58 = vector.shape_cast %57 : vector<8x1x8x4xf32> to vector<8x8x4xf32>
    %59 = arith.addf %56, %58 : vector<8x8x4xf32>
    %cst_20 = arith.constant 2.500000e-01 : f32
    %60 = vector.broadcast %cst_20 : f32 to vector<8x8x4xf32>
    %61 = arith.mulf %60, %59 : vector<8x8x4xf32>
    %62 = vector.shape_cast %61 : vector<8x8x4xf32> to vector<64x4xf32>
    %c0_21 = arith.constant 0 : index
    %c0_22 = arith.constant 0 : index
    %63 = vector.load %arg3[%c0_21, %c0_22] : memref<1x4xf32, #tpu.memory_space<vmem>>, vector<1x4xf32>
    %64 = vector.broadcast %63 : vector<1x4xf32> to vector<64x4xf32>
    %65 = arith.addf %62, %64 : vector<64x4xf32>
    %cst_23 = arith.constant 0.000000e+00 : f32
    %66 = vector.broadcast %cst_23 : f32 to vector<64x4xf32>
    %67 = arith.cmpf ogt, %65, %66 : vector<64x4xf32>
    %cst_24 = arith.constant 2.000000e-01 : f32
    %68 = vector.broadcast %cst_24 : f32 to vector<64x4xf32>
    %69 = arith.mulf %68, %65 : vector<64x4xf32>
    %70 = arith.select %67, %65, %69 : vector<64x4xi1>, vector<64x4xf32>
    %cst_25 = arith.constant 0.000000e+00 : bf16
    %71 = vector.broadcast %cst_25 : bf16 to vector<10x10x4xbf16>
    %c0_26 = arith.constant 0 : index
    %c0_27 = arith.constant 0 : index
    %c0_28 = arith.constant 0 : index
    %72 = vector.load %arg9[%c0_26, %c0_27, %c0_28] : memref<10x10x4xbf16, #tpu.memory_space<vmem>>, vector<10x10x4xbf16>
    tpu.vector_store %arg9[%c0_26, %c0_27, %c0_28], %71 {strides = array<i32>} : memref<10x10x4xbf16, #tpu.memory_space<vmem>>, vector<10x10x4xbf16>,
    %73 = vector.shape_cast %70 : vector<64x4xf32> to vector<8x8x4xf32>
    %74 = arith.truncf %73 : vector<8x8x4xf32> to vector<8x8x4xbf16>
    %c1_29 = arith.constant 1 : index
    %c1_30 = arith.constant 1 : index
    %c0_31 = arith.constant 0 : index
    %75 = vector.load %arg9[%c1_29, %c1_30, %c0_31] : memref<10x10x4xbf16, #tpu.memory_space<vmem>>, vector<8x8x4xbf16>
    tpu.vector_store %arg9[%c1_29, %c1_30, %c0_31], %74 {strides = array<i32>} : memref<10x10x4xbf16, #tpu.memory_space<vmem>>, vector<8x8x4xbf16>,
    %c0_32 = arith.constant 0 : index
    %c0_33 = arith.constant 0 : index
    %c0_34 = arith.constant 0 : index
    %76 = vector.load %arg9[%c0_32, %c0_33, %c0_34] : memref<10x10x4xbf16, #tpu.memory_space<vmem>>, vector<10x10x4xbf16>
    %77 = vector.extract_strided_slice %76 {offsets = [0, 0, 0], sizes = [8, 8, 4], strides = [1, 1, 1]} : vector<10x10x4xbf16> to vector<8x8x4xbf16>
    %78 = vector.shape_cast %77 : vector<8x8x4xbf16> to vector<64x4xbf16>
    %79 = vector.extract_strided_slice %76 {offsets = [0, 1, 0], sizes = [8, 8, 4], strides = [1, 1, 1]} : vector<10x10x4xbf16> to vector<8x8x4xbf16>
    %80 = vector.shape_cast %79 : vector<8x8x4xbf16> to vector<64x4xbf16>
    %81 = vector.extract_strided_slice %76 {offsets = [0, 2, 0], sizes = [8, 8, 4], strides = [1, 1, 1]} : vector<10x10x4xbf16> to vector<8x8x4xbf16>
    %82 = vector.shape_cast %81 : vector<8x8x4xbf16> to vector<64x4xbf16>
    %83 = vector.extract_strided_slice %76 {offsets = [1, 0, 0], sizes = [8, 8, 4], strides = [1, 1, 1]} : vector<10x10x4xbf16> to vector<8x8x4xbf16>
    %84 = vector.shape_cast %83 : vector<8x8x4xbf16> to vector<64x4xbf16>
    %85 = vector.extract_strided_slice %76 {offsets = [1, 1, 0], sizes = [8, 8, 4], strides = [1, 1, 1]} : vector<10x10x4xbf16> to vector<8x8x4xbf16>
    %86 = vector.shape_cast %85 : vector<8x8x4xbf16> to vector<64x4xbf16>
    %87 = vector.extract_strided_slice %76 {offsets = [1, 2, 0], sizes = [8, 8, 4], strides = [1, 1, 1]} : vector<10x10x4xbf16> to vector<8x8x4xbf16>
    %88 = vector.shape_cast %87 : vector<8x8x4xbf16> to vector<64x4xbf16>
    %89 = vector.extract_strided_slice %76 {offsets = [2, 0, 0], sizes = [8, 8, 4], strides = [1, 1, 1]} : vector<10x10x4xbf16> to vector<8x8x4xbf16>
    %90 = vector.shape_cast %89 : vector<8x8x4xbf16> to vector<64x4xbf16>
    %91 = vector.extract_strided_slice %76 {offsets = [2, 1, 0], sizes = [8, 8, 4], strides = [1, 1, 1]} : vector<10x10x4xbf16> to vector<8x8x4xbf16>
    %92 = vector.shape_cast %91 : vector<8x8x4xbf16> to vector<64x4xbf16>
    %93 = vector.extract_strided_slice %76 {offsets = [2, 2, 0], sizes = [8, 8, 4], strides = [1, 1, 1]} : vector<10x10x4xbf16> to vector<8x8x4xbf16>
    %94 = vector.shape_cast %93 : vector<8x8x4xbf16> to vector<64x4xbf16>
    %95 = tpu.concatenate %78, %80, %82, %84, %86, %88, %90, %92, %94 in 1 : vector<64x4xbf16>, vector<64x4xbf16>, vector<64x4xbf16>, vector<64x4xbf16>, vector<64x4xbf16>, vector<64x4xbf16>, vector<64x4xbf16>, vector<64x4xbf16>, vector<64x4xbf16> -> vector<64x36xbf16>
    %c0_35 = arith.constant 0 : index
    %c0_36 = arith.constant 0 : index
    %96 = vector.load %arg4[%c0_35, %c0_36] : memref<36x8xbf16, #tpu.memory_space<vmem>>, vector<36x8xbf16>
    %cst_37 = arith.constant dense<0.000000e+00> : vector<64x8xf32>
    %97 = tpu.matmul %95, %96, %cst_37 {dimension_numbers = #tpu.dot_dimension_numbers<[1], [0], [0], [1], [0, 0, 1, 1], [], []>} : vector<64x36xbf16>, vector<36x8xbf16>, vector<64x8xf32> -> vector<64x8xf32>
    %c0_38 = arith.constant 0 : index
    %c0_39 = arith.constant 0 : index
    %98 = vector.load %arg5[%c0_38, %c0_39] : memref<1x8xf32, #tpu.memory_space<vmem>>, vector<1x8xf32>
    %99 = vector.broadcast %98 : vector<1x8xf32> to vector<64x8xf32>
    %100 = arith.addf %97, %99 : vector<64x8xf32>
    %101 = arith.addf %100, %16 : vector<64x8xf32>
    %cst_40 = arith.constant 0.707106769 : f32
    %102 = vector.broadcast %cst_40 : f32 to vector<64x8xf32>
    %103 = arith.mulf %101, %102 : vector<64x8xf32>
    %c0_41 = arith.constant 0 : index
    %c0_42 = arith.constant 0 : index
    %c0_43 = arith.constant 0 : index
    %104 = vector.load %arg7[%c0_41, %c0_42, %c0_43] : memref<1x64x8xf32, #tpu.memory_space<vmem>>, vector<1x64x8xf32>
    %105 = vector.shape_cast %104 : vector<1x64x8xf32> to vector<64x8xf32>
    %106 = vector.shape_cast %103 : vector<64x8xf32> to vector<1x64x8xf32>
    tpu.vector_store %arg7[%c0_41, %c0_42, %c0_43], %106 {strides = array<i32>} : memref<1x64x8xf32, #tpu.memory_space<vmem>>, vector<1x64x8xf32>,
    return
  }
  func.func @transform_0(%arg0: i32) -> (i32, i32, i32, i32) {
    %c0_i32 = arith.constant 0 : i32
    %c0_i32_0 = arith.constant 0 : i32
    %c0_i32_1 = arith.constant 0 : i32
    %c0_i32_2 = arith.constant 0 : i32
    return %arg0, %c0_i32, %c0_i32_0, %c0_i32_1 : i32, i32, i32, i32
  }
  func.func @transform_1(%arg0: i32) -> (i32, i32) {
    %c0_i32 = arith.constant 0 : i32
    %c0_i32_0 = arith.constant 0 : i32
    %c0_i32_1 = arith.constant 0 : i32
    return %c0_i32, %c0_i32_0 : i32, i32
  }
  func.func @transform_2(%arg0: i32) -> (i32, i32) {
    %c0_i32 = arith.constant 0 : i32
    %c0_i32_0 = arith.constant 0 : i32
    %c0_i32_1 = arith.constant 0 : i32
    return %c0_i32, %c0_i32_0 : i32, i32
  }
  func.func @transform_3(%arg0: i32) -> (i32, i32) {
    %c0_i32 = arith.constant 0 : i32
    %c0_i32_0 = arith.constant 0 : i32
    %c0_i32_1 = arith.constant 0 : i32
    return %c0_i32, %c0_i32_0 : i32, i32
  }
  func.func @transform_4(%arg0: i32) -> (i32, i32) {
    %c0_i32 = arith.constant 0 : i32
    %c0_i32_0 = arith.constant 0 : i32
    %c0_i32_1 = arith.constant 0 : i32
    return %c0_i32, %c0_i32_0 : i32, i32
  }
  func.func @transform_5(%arg0: i32) -> (i32, i32) {
    %c0_i32 = arith.constant 0 : i32
    %c0_i32_0 = arith.constant 0 : i32
    %c0_i32_1 = arith.constant 0 : i32
    return %c0_i32, %c0_i32_0 : i32, i32
  }
  func.func @transform_6(%arg0: i32) -> (i32, i32, i32) {
    %c0_i32 = arith.constant 0 : i32
    %c0_i32_0 = arith.constant 0 : i32
    %c0_i32_1 = arith.constant 0 : i32
    return %arg0, %c0_i32, %c0_i32_0 : i32, i32, i32
  }
}

</mosaic_0001>

<llo_original>
// kernel: tpu_custom_call.1
$region0: #{tpu_custom_call.1}
  #allocation0 [shape = 'u32[]', space=smem, size = 0x4, offset = 0x4, fixed_abs, tag = 'smem constant byte address 0x4 - core index']
  #allocation1 [shape = 'u32[144,128]{1,0:T(1,128)}', space=vmem, size = 0x12000, scoped, tag = 'internal scratch']
  #allocation2 [shape = 'bf16[18,10,8]{2,1,0:T(8,128)(2,1)}', space=vmem, size = 0x12000, scoped, tag = 'scratch operand']
  #allocation3 [shape = 'bf16[10,10,4]{2,1,0:T(8,128)(2,1)}', space=vmem, size = 0xa000, scoped, tag = 'scratch operand']
  %s0 = inlined_call_operand.vmem [shape: f32[2,16,8,8], index: 0, kind: input, shape index: {}]
  %s1 = inlined_call_operand.vmem [shape: bf16[48,4], index: 1, kind: input, shape index: {}]
  %s2 = inlined_call_operand.vmem [shape: f32[1,4], index: 2, kind: input, shape index: {}]
  %s3 = inlined_call_operand.vmem [shape: bf16[36,8], index: 3, kind: input, shape index: {}]
  %s4 = inlined_call_operand.vmem [shape: f32[1,8], index: 4, kind: input, shape index: {}]
  %s5 = inlined_call_operand.vmem [shape: bf16[4,8], index: 5, kind: input, shape index: {}]
  %s6 = inlined_call_operand.vmem [shape: f32[2,64,8], index: 6, kind: output, shape index: {}]
  %s7 = sld [smem:[#allocation0]]
  $region57: #{tpu_custom_call.1} parent=0
    _
  %s9 = ssub.s32 1, %s7
  %s10 = scalar_select 0, %s9, %s7
  loop: start=0, step=1, limit=4
  $region2: #{tpu_custom_call.1} parent=0 // loop_pre_header
    _
  $region3: #{tpu_custom_call.1} parent=0 // loop_header
    %s12 = sphi 0, %s16
    %p13 = scmp.ge.s32.totalorder %s12, 4
    %s22 = sphi 0, %s24
    %s25 = sphi 0, %s22
    %s26 = sphi 0, %s25
    %s42 = sphi 0, %s26
    %s46 = sphi 0, %s46
    %s48 = sphi 0, %s46
    %s49 = sphi 0, %s48
    %s63 = sphi 0, %s49
    %s67 = sphi 0, %s67
    %s69 = sphi 0, %s67
    %s70 = sphi 0, %s69
    %s84 = sphi 0, %s70
    %s88 = sphi 0, %s88
    %s90 = sphi 0, %s88
    %s91 = sphi 0, %s90
    %s105 = sphi 0, %s91
    %s109 = sphi 0, %s109
    %s111 = sphi 0, %s109
    %s112 = sphi 0, %s111
    %s126 = sphi 0, %s112
    %s130 = sphi 0, %s130
    %s132 = sphi 0, %s130
    %s133 = sphi 0, %s132
    %s147 = sphi 0, %s133
    %s153 = sphi 0, %s155
    %s156 = sphi 0, %s153
    %s157 = sphi 0, %s156
    %s173 = sphi 0, %s157
  $region4: #{tpu_custom_call.1} parent=0 // loop_header_branch
    %15 = sbr.rel (%p13) target = $region8
  $region5: #{tpu_custom_call.1} parent=0 // loop_body
    %s17 = ssub.s32 %s12, 1
    %s18 = ssub.s32 %s12, 2
    %s19 = sadd.s32 %s12, 1
    %s20 = ssub.s32 %s12, %s19
    %p21 = scmp.eq.s32.totalorder %s20, 0
    %s23 = sadd.s32 %s22, 1
    %s24 = scalar_select %p21, %s22, %s23
    %p27 = pneg %p21
    %p28 = scmp.eq.s32.totalorder %s12, 1
    %p29 = por %p27, %p28
    %p30 = scmp.ne.s32.totalorder %s22, %s25
    %p31 = scmp.eq.s32.totalorder %s12, 0
    %p32 = por %p30, %p31
    %p33 = scmp.ne.s32.totalorder %s22, %s25
    %p34 = scmp.eq.s32.totalorder %s17, 1
    %p35 = por %p33, %p34
    %p36 = scmp.ne.s32.totalorder %s25, %s26
    %p37 = scmp.eq.s32.totalorder %s17, 0
    %p38 = por %p36, %p37
    %p39 = scmp.ne.s32.totalorder %s25, %s26
    %p40 = scmp.eq.s32.totalorder %s18, 1
    %p41 = por %p39, %p40
    %p43 = scmp.ne.s32.totalorder %s26, %s42
    %p44 = scmp.eq.s32.totalorder %s18, 0
    %p45 = por %p43, %p44
    %s47 = sadd.s32 %s46, 1
    %p50 = scmp.eq.s32.totalorder %s12, 1
    %p51 = scmp.ne.s32.totalorder %s46, %s48
    %p52 = scmp.eq.s32.totalorder %s12, 0
    %p53 = por %p51, %p52
    %p54 = scmp.ne.s32.totalorder %s46, %s48
    %p55 = scmp.eq.s32.totalorder %s17, 1
    %p56 = por %p54, %p55
    %p57 = scmp.ne.s32.totalorder %s48, %s49
    %p58 = scmp.eq.s32.totalorder %s17, 0
    %p59 = por %p57, %p58
    %p60 = scmp.ne.s32.totalorder %s48, %s49
    %p61 = scmp.eq.s32.totalorder %s18, 1
    %p62 = por %p60, %p61
    %p64 = scmp.ne.s32.totalorder %s49, %s63
    %p65 = scmp.eq.s32.totalorder %s18, 0
    %p66 = por %p64, %p65
    %s68 = sadd.s32 %s67, 1
    %p71 = scmp.eq.s32.totalorder %s12, 1
    %p72 = scmp.ne.s32.totalorder %s67, %s69
    %p73 = scmp.eq.s32.totalorder %s12, 0
    %p74 = por %p72, %p73
    %p75 = scmp.ne.s32.totalorder %s67, %s69
    %p76 = scmp.eq.s32.totalorder %s17, 1
    %p77 = por %p75, %p76
    %p78 = scmp.ne.s32.totalorder %s69, %s70
    %p79 = scmp.eq.s32.totalorder %s17, 0
    %p80 = por %p78, %p79
    %p81 = scmp.ne.s32.totalorder %s69, %s70
    %p82 = scmp.eq.s32.totalorder %s18, 1
    %p83 = por %p81, %p82
    %p85 = scmp.ne.s32.totalorder %s70, %s84
    %p86 = scmp.eq.s32.totalorder %s18, 0
    %p87 = por %p85, %p86
    %s89 = sadd.s32 %s88, 1
    %p92 = scmp.eq.s32.totalorder %s12, 1
    %p93 = scmp.ne.s32.totalorder %s88, %s90
    %p94 = scmp.eq.s32.totalorder %s12, 0
    %p95 = por %p93, %p94
    %p96 = scmp.ne.s32.totalorder %s88, %s90
    %p97 = scmp.eq.s32.totalorder %s17, 1
    %p98 = por %p96, %p97
    %p99 = scmp.ne.s32.totalorder %s90, %s91
    %p100 = scmp.eq.s32.totalorder %s17, 0
    %p101 = por %p99, %p100
    %p102 = scmp.ne.s32.totalorder %s90, %s91
    %p103 = scmp.eq.s32.totalorder %s18, 1
    %p104 = por %p102, %p103
    %p106 = scmp.ne.s32.totalorder %s91, %s105
    %p107 = scmp.eq.s32.totalorder %s18, 0
    %p108 = por %p106, %p107
    %s110 = sadd.s32 %s109, 1
    %p113 = scmp.eq.s32.totalorder %s12, 1
    %p114 = scmp.ne.s32.totalorder %s109, %s111
    %p115 = scmp.eq.s32.totalorder %s12, 0
    %p116 = por %p114, %p115
    %p117 = scmp.ne.s32.totalorder %s109, %s111
    %p118 = scmp.eq.s32.totalorder %s17, 1
    %p119 = por %p117, %p118
    %p120 = scmp.ne.s32.totalorder %s111, %s112
    %p121 = scmp.eq.s32.totalorder %s17, 0
    %p122 = por %p120, %p121
    %p123 = scmp.ne.s32.totalorder %s111, %s112
    %p124 = scmp.eq.s32.totalorder %s18, 1
    %p125 = por %p123, %p124
    %p127 = scmp.ne.s32.totalorder %s112, %s126
    %p128 = scmp.eq.s32.totalorder %s18, 0
    %p129 = por %p127, %p128
    %s131 = sadd.s32 %s130, 1
    %p134 = scmp.eq.s32.totalorder %s12, 1
    %p135 = scmp.ne.s32.totalorder %s130, %s132
    %p136 = scmp.eq.s32.totalorder %s12, 0
    %p137 = por %p135, %p136
    %p138 = scmp.ne.s32.totalorder %s130, %s132
    %p139 = scmp.eq.s32.totalorder %s17, 1
    %p140 = por %p138, %p139
    %p141 = scmp.ne.s32.totalorder %s132, %s133
    %p142 = scmp.eq.s32.totalorder %s17, 0
    %p143 = por %p141, %p142
    %p144 = scmp.ne.s32.totalorder %s132, %s133
    %p145 = scmp.eq.s32.totalorder %s18, 1
    %p146 = por %p144, %p145
    %p148 = scmp.ne.s32.totalorder %s133, %s147
    %p149 = scmp.eq.s32.totalorder %s18, 0
    %p150 = por %p148, %p149
    %s151 = ssub.s32 %s12, %s19
    %p152 = scmp.eq.s32.totalorder %s151, 0
    %s154 = sadd.s32 %s153, 1
    %s155 = scalar_select %p152, %s153, %s154
    %p158 = pneg %p152
    %p159 = scmp.eq.s32.totalorder %s12, 1
    %p160 = por %p158, %p159
    %p161 = scmp.ne.s32.totalorder %s153, %s156
    %p162 = scmp.eq.s32.totalorder %s12, 0
    %p163 = por %p161, %p162
    %p164 = scmp.ne.s32.totalorder %s153, %s156
    %p165 = scmp.eq.s32.totalorder %s17, 1
    %p166 = por %p164, %p165
    %p167 = scmp.ne.s32.totalorder %s156, %s157
    %p168 = scmp.eq.s32.totalorder %s17, 0
    %p169 = por %p167, %p168
    %p170 = scmp.ne.s32.totalorder %s156, %s157
    %p171 = scmp.eq.s32.totalorder %s18, 1
    %p172 = por %p170, %p171
    %p174 = scmp.ne.s32.totalorder %s157, %s173
    %p175 = scmp.eq.s32.totalorder %s18, 0
    %p176 = por %p174, %p175
    %p177 = scmp.le.s32.totalorder 1, %s12
    %p178 = scmp.lt.s32.totalorder %s12, 3
    %p179 = pnand %p177, %p178
    %p180 = pneg %p179
    // Predicated region
    $region9: #{tpu_custom_call.1} parent=5 // pred_check
      _
    $region10: #{tpu_custom_call.1} parent=5 // pred_check_branch
      %182 = sbr.rel (%p179) target = $region12
    $region11: #{tpu_custom_call.1} parent=5 // pred_region
      %s183 = ssub.s32 %s12, 1
      // Predicated region
      $region13: #{tpu_custom_call.1} parent=11 // pred_check
        %p184 = pneg %p59
      $region14: #{tpu_custom_call.1} parent=11 // pred_check_branch
        %186 = sbr.rel (%p184) target = $region16
      $region15: #{tpu_custom_call.1} parent=11 // pred_region
        _
      $region16: #{tpu_custom_call.1} parent=11 // pred_fallthru
        _
      // Predicated region
      $region17: #{tpu_custom_call.1} parent=11 // pred_check
        %p187 = pneg %p80
      $region18: #{tpu_custom_call.1} parent=11 // pred_check_branch
        %189 = sbr.rel (%p187) target = $region20
      $region19: #{tpu_custom_call.1} parent=11 // pred_region
        _
      $region20: #{tpu_custom_call.1} parent=11 // pred_fallthru
        _
      // Predicated region
      $region21: #{tpu_custom_call.1} parent=11 // pred_check
        %p190 = pneg %p101
      $region22: #{tpu_custom_call.1} parent=11 // pred_check_branch
        %192 = sbr.rel (%p190) target = $region24
      $region23: #{tpu_custom_call.1} parent=11 // pred_region
        _
      $region24: #{tpu_custom_call.1} parent=11 // pred_fallthru
        _
      // Predicated region
      $region25: #{tpu_custom_call.1} parent=11 // pred_check
        %p193 = pneg %p122
      $region26: #{tpu_custom_call.1} parent=11 // pred_check_branch
        %195 = sbr.rel (%p193) target = $region28
      $region27: #{tpu_custom_call.1} parent=11 // pred_region
        _
      $region28: #{tpu_custom_call.1} parent=11 // pred_fallthru
        _
      // Predicated region
      $region29: #{tpu_custom_call.1} parent=11 // pred_check
        %p196 = pneg %p143
      $region30: #{tpu_custom_call.1} parent=11 // pred_check_branch
        %198 = sbr.rel (%p196) target = $region32
      $region31: #{tpu_custom_call.1} parent=11 // pred_region
        _
      $region32: #{tpu_custom_call.1} parent=11 // pred_fallthru
        _
    $region12: #{tpu_custom_call.1} parent=5 // pred_fallthru
      _
    %p199 = scmp.lt.s32.totalorder %s12, 2
    // Predicated region
    $region33: #{tpu_custom_call.1} parent=5 // pred_check
      %p200 = pneg %p199
    $region34: #{tpu_custom_call.1} parent=5 // pred_check_branch
      %202 = sbr.rel (%p200) target = $region36
    $region35: #{tpu_custom_call.1} parent=5 // pred_region
      // Predicated region
      $region37: #{tpu_custom_call.1} parent=35 // pred_check
        %p203 = pneg %p32
      $region38: #{tpu_custom_call.1} parent=35 // pred_check_branch
        %205 = sbr.rel (%p203) target = $region40
      $region39: #{tpu_custom_call.1} parent=35 // pred_region
        %p206 = scmp.lt.s32.totalorder %s12, 1
        %s207 = scalar_select %p206, %s12, 1
        %s208 = smul.addr %s207, 16
        %s209 = smul.addr %s208, 8
        %s210 = scalar_lea.vmem %s0, %s209
      $region40: #{tpu_custom_call.1} parent=35 // pred_fallthru
        _
    $region36: #{tpu_custom_call.1} parent=5 // pred_fallthru
      _
    %p211 = scmp.le.s32.totalorder 1, %s12
    %p212 = scmp.lt.s32.totalorder %s12, 3
    %p213 = pnand %p211, %p212
    %p214 = pneg %p213
    // Predicated region
    $region41: #{tpu_custom_call.1} parent=5 // pred_check
      _
    $region42: #{tpu_custom_call.1} parent=5 // pred_check_branch
      %216 = sbr.rel (%p213) target = $region44
    $region43: #{tpu_custom_call.1} parent=5 // pred_region
      %s217 = ssub.s32 %s12, 1
      %p218 = scmp.lt.s32.totalorder %s17, 1
      %s219 = scalar_select %p218, %s17, 1
      %s220 = smul.addr %s219, 16
      %s221 = smul.addr %s220, 8
      %s222 = scalar_lea.vmem %s0, %s221
      %p223 = pneg %p38
      %p224 = pneg %p35
      %p225 = pneg %p59
      %p226 = pneg %p56
      %p227 = pneg %p80
      %p228 = pneg %p77
      %p229 = pneg %p101
      %p230 = pneg %p98
      %p231 = pneg %p122
      %p232 = pneg %p119
      %p233 = pneg %p143
      %p234 = pneg %p140
      %p235 = pneg %p169
      %p236 = pneg %p166
      %p237 = scmp.lt.s32.totalorder %s17, 1
      %s238 = scalar_select %p237, %s17, 1
      %s239 = smul.addr %s238, 8
      %s240 = smul.addr %s239, 8
      %s241 = scalar_lea.vmem %s6, %s240
      %p242 = scmp.lt.s32.totalorder %s17, 1
      %s243 = scalar_select %p242, %s17, 1
      %s244 = smul.addr %s243, 16
      %s245 = smul.addr %s244, 8
      %s246 = scalar_lea.vmem %s0, %s245
      %p247 = scmp.lt.s32.totalorder %s17, 1
      %s248 = scalar_select %p247, %s17, 1
      %s249 = smul.addr %s248, 8
      %s250 = smul.addr %s249, 8
      %s251 = scalar_lea.vmem %s6, %s250
      %v253 = vld [vmem:[%s246] sm:$0xff]
      %v254 = vld [vmem:[%s246 + $0x8] sm:$0xff]
      %v255 = vld [vmem:[%s246 + $0x10] sm:$0xff]
      %v256 = vld [vmem:[%s246 + $0x18] sm:$0xff]
      %v257 = vld [vmem:[%s246 + $0x20] sm:$0xff]
      %v258 = vld [vmem:[%s246 + $0x28] sm:$0xff]
      %v259 = vld [vmem:[%s246 + $0x30] sm:$0xff]
      %v260 = vld [vmem:[%s246 + $0x38] sm:$0xff]
      %v261 = vld [vmem:[%s246 + $0x40] sm:$0xff]
      %v262 = vld [vmem:[%s246 + $0x48] sm:$0xff]
      %v263 = vld [vmem:[%s246 + $0x50] sm:$0xff]
      %v264 = vld [vmem:[%s246 + $0x58] sm:$0xff]
      %v265 = vld [vmem:[%s246 + $0x60] sm:$0xff]
      %v266 = vld [vmem:[%s246 + $0x68] sm:$0xff]
      %v267 = vld [vmem:[%s246 + $0x70] sm:$0xff]
      %v268 = vld [vmem:[%s246 + $0x78] sm:$0xff]
      %285 = vrot.lane.b32.xlu0 %v253, 124
      %v286 = vpop.permute.xlu0 %285
      %287 = vrot.lane.b32.xlu0 %v254, 124
      %v288 = vpop.permute.xlu0 %287
      %289 = vrot.lane.b32.xlu0 %v255, 124
      %v290 = vpop.permute.xlu0 %289
      %291 = vrot.lane.b32.xlu0 %v256, 124
      %v292 = vpop.permute.xlu0 %291
      %293 = vrot.lane.b32.xlu0 %v257, 124
      %v294 = vpop.permute.xlu0 %293
      %295 = vrot.lane.b32.xlu0 %v258, 124
      %v296 = vpop.permute.xlu0 %295
      %297 = vrot.lane.b32.xlu0 %v259, 124
      %v298 = vpop.permute.xlu0 %297
      %299 = vrot.lane.b32.xlu0 %v260, 124
      %v300 = vpop.permute.xlu0 %299
      %301 = vrot.lane.b32.xlu0 %v261, 124
      %v302 = vpop.permute.xlu0 %301
      %303 = vrot.lane.b32.xlu0 %v262, 124
      %v304 = vpop.permute.xlu0 %303
      %305 = vrot.lane.b32.xlu0 %v263, 124
      %v306 = vpop.permute.xlu0 %305
      %307 = vrot.lane.b32.xlu0 %v264, 124
      %v308 = vpop.permute.xlu0 %307
      %309 = vrot.lane.b32.xlu0 %v265, 124
      %v310 = vpop.permute.xlu0 %309
      %311 = vrot.lane.b32.xlu0 %v266, 124
      %v312 = vpop.permute.xlu0 %311
      %313 = vrot.lane.b32.xlu0 %v267, 124
      %v314 = vpop.permute.xlu0 %313
      %315 = vrot.lane.b32.xlu0 %v268, 124
      %v316 = vpop.permute.xlu0 %315
      %v333 = vadd.f32 %v253, %v286
      %v334 = vadd.f32 %v254, %v288
      %v335 = vadd.f32 %v255, %v290
      %v336 = vadd.f32 %v256, %v292
      %v337 = vadd.f32 %v257, %v294
      %v338 = vadd.f32 %v258, %v296
      %v339 = vadd.f32 %v259, %v298
      %v340 = vadd.f32 %v260, %v300
      %v341 = vadd.f32 %v261, %v302
      %v342 = vadd.f32 %v262, %v304
      %v343 = vadd.f32 %v263, %v306
      %v344 = vadd.f32 %v264, %v308
      %v345 = vadd.f32 %v265, %v310
      %v346 = vadd.f32 %v266, %v312
      %v347 = vadd.f32 %v267, %v314
      %v348 = vadd.f32 %v268, %v316
      %v349 = vadd.f32 %v333, %v334
      %v350 = vadd.f32 %v335, %v336
      %v351 = vadd.f32 %v337, %v338
      %v352 = vadd.f32 %v339, %v340
      %v353 = vadd.f32 %v341, %v342
      %v354 = vadd.f32 %v343, %v344
      %v355 = vadd.f32 %v345, %v346
      %v356 = vadd.f32 %v347, %v348
      %v357 = vmul.f32 %v349, 0.25
      %v358 = vmul.f32 %v350, 0.25
      %v359 = vmul.f32 %v351, 0.25
      %v360 = vmul.f32 %v352, 0.25
      %v361 = vmul.f32 %v353, 0.25
      %v362 = vmul.f32 %v354, 0.25
      %v363 = vmul.f32 %v355, 0.25
      %v364 = vmul.f32 %v356, 0.25
      %v365 = vpack.c.bf16 %v358, %v357
      %v366 = vpack.c.bf16 %v360, %v359
      %v367 = vpack.c.bf16 %v362, %v361
      %v368 = vpack.c.bf16 %v364, %v363
      %v369 = vld [vmem:[%s5] sm:$0x3]
      %vm370 = vcmask 31744
      %v372 = vsel %vm370, %v365, 0
      %v375 = vsel %vm370, %v366, 0
      %v378 = vsel %vm370, %v367, 0
      %v381 = vsel %vm370, %v368, 0
      %vm383 = vcmask 1041408
      %v385 = vsel %vm383, %v369, 0
      %387 = vmatprep.subr.bf16.mxu0 0
      %388 = vmatpush1.bf16.msra.mxu0 %v385
      %389 = vmatprep.subr.bf16.mxu0 0
      %390 = vmatpush1.bf16.msra.mxu0 0
      %391 = vmatprep.subr.bf16.mxu0 0
      %392 = vmatpush1.bf16.msra.mxu0 0
      %393 = vmatprep.subr.bf16.mxu0 0
      %394 = vmatpush1.bf16.msra.mxu0 0
      %395 = vmatprep.subr.bf16.mxu0 0
      %396 = vmatpush1.bf16.msra.mxu0 0
      %397 = vmatprep.subr.bf16.mxu0 0
      %398 = vmatpush1.bf16.msra.mxu0 0
      %399 = vmatprep.subr.bf16.mxu0 0
      %400 = vmatpush1.bf16.msra.mxu0 0
      %401 = vmatprep.subr.bf16.mxu0 0
      %402 = vmatpush1.bf16.msra.mxu0 0
      %403 = vmatprep.subr.bf16.mxu0 0
      %404 = vmatpush1.bf16.msra.mxu0 0
      %405 = vmatprep.subr.bf16.mxu0 0
      %406 = vmatpush1.bf16.msra.mxu0 0
      %407 = vmatprep.subr.bf16.mxu0 0
      %408 = vmatpush1.bf16.msra.mxu0 0
      %409 = vmatprep.subr.bf16.mxu0 0
      %410 = vmatpush1.bf16.msra.mxu0 0
      %411 = vmatprep.subr.bf16.mxu0 0
      %412 = vmatpush1.bf16.msra.mxu0 0
      %413 = vmatprep.subr.bf16.mxu0 0
      %414 = vmatpush1.bf16.msra.mxu0 0
      %415 = vmatprep.subr.bf16.mxu0 0
      %416 = vmatpush1.bf16.msra.mxu0 0
      %417 = vmatprep.subr.bf16.mxu0 0
      %418 = vmatpush1.bf16.msra.mxu0 0
      %419 = vmatprep.mubr.bf16.mxu0 0
      %420 = vmatmul.mubr.bf16.gmra.mrb[0].mxu0 %v372
      %v421 = vpop.f32.mrb[0].mxu0
      %v422 = vadd.f32 0.0, %v421
      %v423 = vpop.f32.mrb[0].mxu0
      %v424 = vpop.f32.mrb[0].mxu0
      %v425 = vadd.f32 0.0, %v424
      %v426 = vpop.f32.mrb[0].mxu0
      %427 = vmatprep.mubr.bf16.mxu0 0
      %428 = vmatmul.mubr.bf16.gmra.mrb[0].mxu0 %v375
      %v429 = vpop.f32.mrb[0].mxu0
      %v430 = vadd.f32 0.0, %v429
      %v431 = vpop.f32.mrb[0].mxu0
      %v432 = vpop.f32.mrb[0].mxu0
      %v433 = vadd.f32 0.0, %v432
      %v434 = vpop.f32.mrb[0].mxu0
      %435 = vmatprep.mubr.bf16.mxu0 0
      %436 = vmatmul.mubr.bf16.gmra.mrb[0].mxu0 %v378
      %v437 = vpop.f32.mrb[0].mxu0
      %v438 = vadd.f32 0.0, %v437
      %v439 = vpop.f32.mrb[0].mxu0
      %v440 = vpop.f32.mrb[0].mxu0
      %v441 = vadd.f32 0.0, %v440
      %v442 = vpop.f32.mrb[0].mxu0
      %443 = vmatprep.mubr.bf16.mxu0 0
      %444 = vmatmul.mubr.bf16.gmra.mrb[0].mxu0 %v381
      %v445 = vpop.f32.mrb[0].mxu0
      %v446 = vadd.f32 0.0, %v445
      %v447 = vpop.f32.mrb[0].mxu0
      %v448 = vpop.f32.mrb[0].mxu0
      %v449 = vadd.f32 0.0, %v448
      %v450 = vpop.f32.mrb[0].mxu0
      %451 = vdwg.mxu0
      %vm452 = vcmp.gt.f32.partialorder %v253, 0.0
      %vm453 = vcmp.gt.f32.partialorder %v254, 0.0
      %vm454 = vcmp.gt.f32.partialorder %v255, 0.0
      %vm455 = vcmp.gt.f32.partialorder %v256, 0.0
      %vm456 = vcmp.gt.f32.partialorder %v257, 0.0
      %vm457 = vcmp.gt.f32.partialorder %v258, 0.0
      %vm458 = vcmp.gt.f32.partialorder %v259, 0.0
      %vm459 = vcmp.gt.f32.partialorder %v260, 0.0
      %vm460 = vcmp.gt.f32.partialorder %v261, 0.0
      %vm461 = vcmp.gt.f32.partialorder %v262, 0.0
      %vm462 = vcmp.gt.f32.partialorder %v263, 0.0
      %vm463 = vcmp.gt.f32.partialorder %v264, 0.0
      %vm464 = vcmp.gt.f32.partialorder %v265, 0.0
      %vm465 = vcmp.gt.f32.partialorder %v266, 0.0
      %vm466 = vcmp.gt.f32.partialorder %v267, 0.0
      %vm467 = vcmp.gt.f32.partialorder %v268, 0.0
      %v468 = vmul.f32 %v253, 0.2
      %v469 = vmul.f32 %v254, 0.2
      %v470 = vmul.f32 %v255, 0.2
      %v471 = vmul.f32 %v256, 0.2
      %v472 = vmul.f32 %v257, 0.2
      %v473 = vmul.f32 %v258, 0.2
      %v474 = vmul.f32 %v259, 0.2
      %v475 = vmul.f32 %v260, 0.2
      %v476 = vmul.f32 %v261, 0.2
      %v477 = vmul.f32 %v262, 0.2
      %v478 = vmul.f32 %v263, 0.2
      %v479 = vmul.f32 %v264, 0.2
      %v480 = vmul.f32 %v265, 0.2
      %v481 = vmul.f32 %v266, 0.2
      %v482 = vmul.f32 %v267, 0.2
      %v483 = vmul.f32 %v268, 0.2
      %v484 = vsel %vm452, %v253, %v468
      %v485 = vsel %vm453, %v254, %v469
      %v486 = vsel %vm454, %v255, %v470
      %v487 = vsel %vm455, %v256, %v471
      %v488 = vsel %vm456, %v257, %v472
      %v489 = vsel %vm457, %v258, %v473
      %v490 = vsel %vm458, %v259, %v474
      %v491 = vsel %vm459, %v260, %v475
      %v492 = vsel %vm460, %v261, %v476
      %v493 = vsel %vm461, %v262, %v477
      %v494 = vsel %vm462, %v263, %v478
      %v495 = vsel %vm463, %v264, %v479
      %v496 = vsel %vm464, %v265, %v480
      %v497 = vsel %vm465, %v266, %v481
      %v498 = vsel %vm466, %v267, %v482
      %v499 = vsel %vm467, %v268, %v483
      %v500 = vpack.c.bf16 %v484, %v484
      %v501 = vpack.c.bf16 %v485, %v485
      %v502 = vpack.c.bf16 %v486, %v486
      %v503 = vpack.c.bf16 %v487, %v487
      %v504 = vpack.c.bf16 %v488, %v488
      %v505 = vpack.c.bf16 %v489, %v489
      %v506 = vpack.c.bf16 %v490, %v490
      %v507 = vpack.c.bf16 %v491, %v491
      %v508 = vpack.c.bf16 %v492, %v492
      %v509 = vpack.c.bf16 %v493, %v493
      %v510 = vpack.c.bf16 %v494, %v494
      %v511 = vpack.c.bf16 %v495, %v495
      %v512 = vpack.c.bf16 %v496, %v496
      %v513 = vpack.c.bf16 %v497, %v497
      %v514 = vpack.c.bf16 %v498, %v498
      %v515 = vpack.c.bf16 %v499, %v499
      %vm516 = vcmask 60416
      %517 = vst.msk [vmem:[#allocation2] sm:$0xf] %vm516, 0
      %vm518 = vcmask 57344
      %519 = vst.msk [vmem:[#allocation2 + $0x4] sm:$0x1] %vm518, 0
      %520 = vst.msk [vmem:[#allocation2 + $0x8] sm:$0xf] %vm516, 0
      %521 = vst.msk [vmem:[#allocation2 + $0xc] sm:$0x1] %vm518, 0
      %522 = vst.msk [vmem:[#allocation2 + $0x10] sm:$0xf] %vm516, 0
      %523 = vst.msk [vmem:[#allocation2 + $0x14] sm:$0x1] %vm518, 0
      %524 = vst.msk [vmem:[#allocation2 + $0x18] sm:$0xf] %vm516, 0
      %525 = vst.msk [vmem:[#allocation2 + $0x1c] sm:$0x1] %vm518, 0
      %526 = vst.msk [vmem:[#allocation2 + $0x20] sm:$0xf] %vm516, 0
      %527 = vst.msk [vmem:[#allocation2 + $0x24] sm:$0x1] %vm518, 0
      %528 = vst.msk [vmem:[#allocation2 + $0x28] sm:$0xf] %vm516, 0
      %529 = vst.msk [vmem:[#allocation2 + $0x2c] sm:$0x1] %vm518, 0
      %530 = vst.msk [vmem:[#allocation2 + $0x30] sm:$0xf] %vm516, 0
      %531 = vst.msk [vmem:[#allocation2 + $0x34] sm:$0x1] %vm518, 0
      %532 = vst.msk [vmem:[#allocation2 + $0x38] sm:$0xf] %vm516, 0
      %533 = vst.msk [vmem:[#allocation2 + $0x3c] sm:$0x1] %vm518, 0
      %534 = vst.msk [vmem:[#allocation2 + $0x40] sm:$0xf] %vm516, 0
      %535 = vst.msk [vmem:[#allocation2 + $0x44] sm:$0x1] %vm518, 0
      %536 = vst.msk [vmem:[#allocation2 + $0x48] sm:$0xf] %vm516, 0
      %537 = vst.msk [vmem:[#allocation2 + $0x4c] sm:$0x1] %vm518, 0
      %538 = vst.msk [vmem:[#allocation2 + $0x50] sm:$0xf] %vm516, 0
      %539 = vst.msk [vmem:[#allocation2 + $0x54] sm:$0x1] %vm518, 0
      %540 = vst.msk [vmem:[#allocation2 + $0x58] sm:$0xf] %vm516, 0
      %541 = vst.msk [vmem:[#allocation2 + $0x5c] sm:$0x1] %vm518, 0
      %542 = vst.msk [vmem:[#allocation2 + $0x60] sm:$0xf] %vm516, 0
      %543 = vst.msk [vmem:[#allocation2 + $0x64] sm:$0x1] %vm518, 0
      %544 = vst.msk [vmem:[#allocation2 + $0x68] sm:$0xf] %vm516, 0
      %545 = vst.msk [vmem:[#allocation2 + $0x6c] sm:$0x1] %vm518, 0
      %546 = vst.msk [vmem:[#allocation2 + $0x70] sm:$0xf] %vm516, 0
      %547 = vst.msk [vmem:[#allocation2 + $0x74] sm:$0x1] %vm518, 0
      %548 = vst.msk [vmem:[#allocation2 + $0x78] sm:$0xf] %vm516, 0
      %549 = vst.msk [vmem:[#allocation2 + $0x7c] sm:$0x1] %vm518, 0
      %550 = vst.msk [vmem:[#allocation2 + $0x80] sm:$0xf] %vm516, 0
      %551 = vst.msk [vmem:[#allocation2 + $0x84] sm:$0x1] %vm518, 0
      %552 = vst.msk [vmem:[#allocation2 + $0x88] sm:$0xf] %vm516, 0
      %553 = vst.msk [vmem:[#allocation2 + $0x8c] sm:$0x1] %vm518, 0
      %v570 = vunpack.c.l.b16 %v500
      %v571 = vunpack.c.l.b16 %v501
      %v572 = vunpack.c.l.b16 %v502
      %v573 = vunpack.c.l.b16 %v503
      %v574 = vunpack.c.l.b16 %v504
      %v575 = vunpack.c.l.b16 %v505
      %v576 = vunpack.c.l.b16 %v506
      %v577 = vunpack.c.l.b16 %v507
      %v578 = vunpack.c.l.b16 %v508
      %v579 = vunpack.c.l.b16 %v509
      %v580 = vunpack.c.l.b16 %v510
      %v581 = vunpack.c.l.b16 %v511
      %v582 = vunpack.c.l.b16 %v512
      %v583 = vunpack.c.l.b16 %v513
      %v584 = vunpack.c.l.b16 %v514
      %v585 = vunpack.c.l.b16 %v515
      %v586 = vpack.c.b16 %v570, %v570
      %v587 = vpack.c.b16 %v571, %v571
      %v588 = vpack.c.b16 %v572, %v572
      %v589 = vpack.c.b16 %v573, %v573
      %v590 = vpack.c.b16 %v574, %v574
      %v591 = vpack.c.b16 %v575, %v575
      %v592 = vpack.c.b16 %v576, %v576
      %v593 = vpack.c.b16 %v577, %v577
      %v594 = vpack.c.b16 %v578, %v578
      %v595 = vpack.c.b16 %v579, %v579
      %v596 = vpack.c.b16 %v580, %v580
      %v597 = vpack.c.b16 %v581, %v581
      %v598 = vpack.c.b16 %v582, %v582
      %v599 = vpack.c.b16 %v583, %v583
      %v600 = vpack.c.b16 %v584, %v584
      %v601 = vpack.c.b16 %v585, %v585
      %v603 = vshrl.u32 %v586, 16
      %v605 = vrot.slane %v603, 7
      %v606 = vshll.u32 %v586, 16
      %v608 = vor.u32 %v605, %v606
      %v609 = vrot.slane %v605, 4
      %v611 = vshrl.u32 %v587, 16
      %v613 = vrot.slane %v611, 7
      %v614 = vshll.u32 %v587, 16
      %v616 = vor.u32 %v613, %v614
      %v617 = vrot.slane %v613, 4
      %v619 = vshrl.u32 %v588, 16
      %v621 = vrot.slane %v619, 7
      %v622 = vshll.u32 %v588, 16
      %v624 = vor.u32 %v621, %v622
      %v625 = vrot.slane %v621, 4
      %v627 = vshrl.u32 %v589, 16
      %v629 = vrot.slane %v627, 7
      %v630 = vshll.u32 %v589, 16
      %v632 = vor.u32 %v629, %v630
      %v633 = vrot.slane %v629, 4
      %v635 = vshrl.u32 %v590, 16
      %v637 = vrot.slane %v635, 7
      %v638 = vshll.u32 %v590, 16
      %v640 = vor.u32 %v637, %v638
      %v641 = vrot.slane %v637, 4
      %v643 = vshrl.u32 %v591, 16
      %v645 = vrot.slane %v643, 7
      %v646 = vshll.u32 %v591, 16
      %v648 = vor.u32 %v645, %v646
      %v649 = vrot.slane %v645, 4
      %v651 = vshrl.u32 %v592, 16
      %v653 = vrot.slane %v651, 7
      %v654 = vshll.u32 %v592, 16
      %v656 = vor.u32 %v653, %v654
      %v657 = vrot.slane %v653, 4
      %v659 = vshrl.u32 %v593, 16
      %v661 = vrot.slane %v659, 7
      %v662 = vshll.u32 %v593, 16
      %v664 = vor.u32 %v661, %v662
      %v665 = vrot.slane %v661, 4
      %v667 = vshrl.u32 %v594, 16
      %v669 = vrot.slane %v667, 7
      %v670 = vshll.u32 %v594, 16
      %v672 = vor.u32 %v669, %v670
      %v673 = vrot.slane %v669, 4
      %v675 = vshrl.u32 %v595, 16
      %v677 = vrot.slane %v675, 7
      %v678 = vshll.u32 %v595, 16
      %v680 = vor.u32 %v677, %v678
      %v681 = vrot.slane %v677, 4
      %v683 = vshrl.u32 %v596, 16
      %v685 = vrot.slane %v683, 7
      %v686 = vshll.u32 %v596, 16
      %v688 = vor.u32 %v685, %v686
      %v689 = vrot.slane %v685, 4
      %v691 = vshrl.u32 %v597, 16
      %v693 = vrot.slane %v691, 7
      %v694 = vshll.u32 %v597, 16
      %v696 = vor.u32 %v693, %v694
      %v697 = vrot.slane %v693, 4
      %v699 = vshrl.u32 %v598, 16
      %v701 = vrot.slane %v699, 7
      %v702 = vshll.u32 %v598, 16
      %v704 = vor.u32 %v701, %v702
      %v705 = vrot.slane %v701, 4
      %v707 = vshrl.u32 %v599, 16
      %v709 = vrot.slane %v707, 7
      %v710 = vshll.u32 %v599, 16
      %v712 = vor.u32 %v709, %v710
      %v713 = vrot.slane %v709, 4
      %v715 = vshrl.u32 %v600, 16
      %v717 = vrot.slane %v715, 7
      %v718 = vshll.u32 %v600, 16
      %v720 = vor.u32 %v717, %v718
      %v721 = vrot.slane %v717, 4
      %v723 = vshrl.u32 %v601, 16
      %v725 = vrot.slane %v723, 7
      %v726 = vshll.u32 %v601, 16
      %v728 = vor.u32 %v725, %v726
      %v729 = vrot.slane %v725, 4
      %s762 = scalar_lea.vmem [#allocation2], 8
      %vm763 = vcmask 60416
      %vm764 = vsmask.f32 7938
      %vm765 = vmand %vm763, %vm764
      %v766 = vld [vmem:[%s762] sm:$0xf]
      %v767 = vsel %vm765, %v608, %v766
      %768 = vst [vmem:[%s762] sm:$0xf] %v767
      %vm769 = vcmask 57344
      %vm770 = vsmask.f32 256
      %vm771 = vmand %vm769, %vm770
      %v772 = vld [vmem:[%s762 + $0x4] sm:$0x1]
      %v773 = vsel %vm771, %v609, %v772
      %774 = vst [vmem:[%s762 + $0x4] sm:$0x1] %v773
      %v775 = vld [vmem:[%s762 + $0x8] sm:$0xf]
      %v776 = vsel %vm765, %v616, %v775
      %777 = vst [vmem:[%s762 + $0x8] sm:$0xf] %v776
      %v778 = vld [vmem:[%s762 + $0xc] sm:$0x1]
      %v779 = vsel %vm771, %v617, %v778
      %780 = vst [vmem:[%s762 + $0xc] sm:$0x1] %v779
      %v781 = vld [vmem:[%s762 + $0x10] sm:$0xf]
      %v782 = vsel %vm765, %v624, %v781
      %783 = vst [vmem:[%s762 + $0x10] sm:$0xf] %v782
      %v784 = vld [vmem:[%s762 + $0x14] sm:$0x1]
      %v785 = vsel %vm771, %v625, %v784
      %786 = vst [vmem:[%s762 + $0x14] sm:$0x1] %v785
      %v787 = vld [vmem:[%s762 + $0x18] sm:$0xf]
      %v788 = vsel %vm765, %v632, %v787
      %789 = vst [vmem:[%s762 + $0x18] sm:$0xf] %v788
      %v790 = vld [vmem:[%s762 + $0x1c] sm:$0x1]
      %v791 = vsel %vm771, %v633, %v790
      %792 = vst [vmem:[%s762 + $0x1c] sm:$0x1] %v791
      %v793 = vld [vmem:[%s762 + $0x20] sm:$0xf]
      %v794 = vsel %vm765, %v640, %v793
      %795 = vst [vmem:[%s762 + $0x20] sm:$0xf] %v794
      %v796 = vld [vmem:[%s762 + $0x24] sm:$0x1]
      %v797 = vsel %vm771, %v641, %v796
      %798 = vst [vmem:[%s762 + $0x24] sm:$0x1] %v797
      %v799 = vld [vmem:[%s762 + $0x28] sm:$0xf]
      %v800 = vsel %vm765, %v648, %v799
      %801 = vst [vmem:[%s762 + $0x28] sm:$0xf] %v800
      %v802 = vld [vmem:[%s762 + $0x2c] sm:$0x1]
      %v803 = vsel %vm771, %v649, %v802
      %804 = vst [vmem:[%s762 + $0x2c] sm:$0x1] %v803
      %v805 = vld [vmem:[%s762 + $0x30] sm:$0xf]
      %v806 = vsel %vm765, %v656, %v805
      %807 = vst [vmem:[%s762 + $0x30] sm:$0xf] %v806
      %v808 = vld [vmem:[%s762 + $0x34] sm:$0x1]
      %v809 = vsel %vm771, %v657, %v808
      %810 = vst [vmem:[%s762 + $0x34] sm:$0x1] %v809
      %v811 = vld [vmem:[%s762 + $0x38] sm:$0xf]
      %v812 = vsel %vm765, %v664, %v811
      %813 = vst [vmem:[%s762 + $0x38] sm:$0xf] %v812
      %v814 = vld [vmem:[%s762 + $0x3c] sm:$0x1]
      %v815 = vsel %vm771, %v665, %v814
      %816 = vst [vmem:[%s762 + $0x3c] sm:$0x1] %v815
      %v817 = vld [vmem:[%s762 + $0x40] sm:$0xf]
      %v818 = vsel %vm765, %v672, %v817
      %819 = vst [vmem:[%s762 + $0x40] sm:$0xf] %v818
      %v820 = vld [vmem:[%s762 + $0x44] sm:$0x1]
      %v821 = vsel %vm771, %v673, %v820
      %822 = vst [vmem:[%s762 + $0x44] sm:$0x1] %v821
      %v823 = vld [vmem:[%s762 + $0x48] sm:$0xf]
      %v824 = vsel %vm765, %v680, %v823
      %825 = vst [vmem:[%s762 + $0x48] sm:$0xf] %v824
      %v826 = vld [vmem:[%s762 + $0x4c] sm:$0x1]
      %v827 = vsel %vm771, %v681, %v826
      %828 = vst [vmem:[%s762 + $0x4c] sm:$0x1] %v827
      %v829 = vld [vmem:[%s762 + $0x50] sm:$0xf]
      %v830 = vsel %vm765, %v688, %v829
      %831 = vst [vmem:[%s762 + $0x50] sm:$0xf] %v830
      %v832 = vld [vmem:[%s762 + $0x54] sm:$0x1]
      %v833 = vsel %vm771, %v689, %v832
      %834 = vst [vmem:[%s762 + $0x54] sm:$0x1] %v833
      %v835 = vld [vmem:[%s762 + $0x58] sm:$0xf]
      %v836 = vsel %vm765, %v696, %v835
      %837 = vst [vmem:[%s762 + $0x58] sm:$0xf] %v836
      %v838 = vld [vmem:[%s762 + $0x5c] sm:$0x1]
      %v839 = vsel %vm771, %v697, %v838
      %840 = vst [vmem:[%s762 + $0x5c] sm:$0x1] %v839
      %v841 = vld [vmem:[%s762 + $0x60] sm:$0xf]
      %v842 = vsel %vm765, %v704, %v841
      %843 = vst [vmem:[%s762 + $0x60] sm:$0xf] %v842
      %v844 = vld [vmem:[%s762 + $0x64] sm:$0x1]
      %v845 = vsel %vm771, %v705, %v844
      %846 = vst [vmem:[%s762 + $0x64] sm:$0x1] %v845
      %v847 = vld [vmem:[%s762 + $0x68] sm:$0xf]
      %v848 = vsel %vm765, %v712, %v847
      %849 = vst [vmem:[%s762 + $0x68] sm:$0xf] %v848
      %v850 = vld [vmem:[%s762 + $0x6c] sm:$0x1]
      %v851 = vsel %vm771, %v713, %v850
      %852 = vst [vmem:[%s762 + $0x6c] sm:$0x1] %v851
      %v853 = vld [vmem:[%s762 + $0x70] sm:$0xf]
      %v854 = vsel %vm765, %v720, %v853
      %855 = vst [vmem:[%s762 + $0x70] sm:$0xf] %v854
      %v856 = vld [vmem:[%s762 + $0x74] sm:$0x1]
      %v857 = vsel %vm771, %v721, %v856
      %858 = vst [vmem:[%s762 + $0x74] sm:$0x1] %v857
      %v859 = vld [vmem:[%s762 + $0x78] sm:$0xf]
      %v860 = vsel %vm765, %v728, %v859
      %861 = vst [vmem:[%s762 + $0x78] sm:$0xf] %v860
      %v862 = vld [vmem:[%s762 + $0x7c] sm:$0x1]
      %v863 = vsel %vm771, %v729, %v862
      %864 = vst [vmem:[%s762 + $0x7c] sm:$0x1] %v863
      %v865 = vld [vmem:[#allocation2] sm:$0xf]
      %v866 = vld [vmem:[#allocation2 + $0x4] sm:$0x1]
      %v867 = vld [vmem:[#allocation2 + $0x8] sm:$0xf]
      %v868 = vld [vmem:[#allocation2 + $0xc] sm:$0x1]
      %v869 = vld [vmem:[#allocation2 + $0x10] sm:$0xf]
      %v870 = vld [vmem:[#allocation2 + $0x14] sm:$0x1]
      %v871 = vld [vmem:[#allocation2 + $0x18] sm:$0xf]
      %v872 = vld [vmem:[#allocation2 + $0x1c] sm:$0x1]
      %v873 = vld [vmem:[#allocation2 + $0x20] sm:$0xf]
      %v874 = vld [vmem:[#allocation2 + $0x24] sm:$0x1]
      %v875 = vld [vmem:[#allocation2 + $0x28] sm:$0xf]
      %v876 = vld [vmem:[#allocation2 + $0x2c] sm:$0x1]
      %v877 = vld [vmem:[#allocation2 + $0x30] sm:$0xf]
      %v878 = vld [vmem:[#allocation2 + $0x34] sm:$0x1]
      %v879 = vld [vmem:[#allocation2 + $0x38] sm:$0xf]
      %v880 = vld [vmem:[#allocation2 + $0x3c] sm:$0x1]
      %v881 = vld [vmem:[#allocation2 + $0x40] sm:$0xf]
      %v882 = vld [vmem:[#allocation2 + $0x44] sm:$0x1]
      %v883 = vld [vmem:[#allocation2 + $0x48] sm:$0xf]
      %v884 = vld [vmem:[#allocation2 + $0x4c] sm:$0x1]
      %v885 = vld [vmem:[#allocation2 + $0x50] sm:$0xf]
      %v886 = vld [vmem:[#allocation2 + $0x54] sm:$0x1]
      %v887 = vld [vmem:[#allocation2 + $0x58] sm:$0xf]
      %v888 = vld [vmem:[#allocation2 + $0x5c] sm:$0x1]
      %v889 = vld [vmem:[#allocation2 + $0x60] sm:$0xf]
      %v890 = vld [vmem:[#allocation2 + $0x64] sm:$0x1]
      %v891 = vld [vmem:[#allocation2 + $0x68] sm:$0xf]
      %v892 = vld [vmem:[#allocation2 + $0x6c] sm:$0x1]
      %v893 = vld [vmem:[#allocation2 + $0x70] sm:$0xf]
      %v894 = vld [vmem:[#allocation2 + $0x74] sm:$0x1]
      %v895 = vld [vmem:[#allocation2 + $0x78] sm:$0xf]
      %v896 = vld [vmem:[#allocation2 + $0x7c] sm:$0x1]
      %v897 = vld [vmem:[#allocation2 + $0x80] sm:$0xf]
      %v898 = vld [vmem:[#allocation2 + $0x84] sm:$0x1]
      %v899 = vld [vmem:[#allocation2 + $0x88] sm:$0xf]
      %v900 = vld [vmem:[#allocation2 + $0x8c] sm:$0x1]
      %vm901 = vsmask.f32 3328
      %vm902 = vsmask.f32 7440
      %vm903 = vmor %vm901, %vm902
      %v905 = vshrl.u32 %v865, 16
      %v907 = vrot.slane %v905, 4
      %v908 = vshll.u32 %v865, 16
      %v910 = vrot.slane %v908, 5
      %v911 = vor.u32 %v907, %v910
      %v912 = vrot.slane %v911, 4
      %v914 = vshll.u32 %v866, 16
      %v916 = vrot.slane %v914, 5
      %v917 = vsel %vm903, %v912, %v916
      %v919 = vshrl.u32 %v867, 16
      %v921 = vrot.slane %v919, 4
      %v922 = vshll.u32 %v867, 16
      %v924 = vrot.slane %v922, 5
      %v925 = vor.u32 %v921, %v924
      %v926 = vrot.slane %v925, 4
      %v928 = vshll.u32 %v868, 16
      %v930 = vrot.slane %v928, 5
      %v931 = vsel %vm903, %v926, %v930
      %v933 = vshrl.u32 %v869, 16
      %v935 = vrot.slane %v933, 4
      %v936 = vshll.u32 %v869, 16
      %v938 = vrot.slane %v936, 5
      %v939 = vor.u32 %v935, %v938
      %v940 = vrot.slane %v939, 4
      %v942 = vshll.u32 %v870, 16
      %v944 = vrot.slane %v942, 5
      %v945 = vsel %vm903, %v940, %v944
      %v947 = vshrl.u32 %v871, 16
      %v949 = vrot.slane %v947, 4
      %v950 = vshll.u32 %v871, 16
      %v952 = vrot.slane %v950, 5
      %v953 = vor.u32 %v949, %v952
      %v954 = vrot.slane %v953, 4
      %v956 = vshll.u32 %v872, 16
      %v958 = vrot.slane %v956, 5
      %v959 = vsel %vm903, %v954, %v958
      %v961 = vshrl.u32 %v873, 16
      %v963 = vrot.slane %v961, 4
      %v964 = vshll.u32 %v873, 16
      %v966 = vrot.slane %v964, 5
      %v967 = vor.u32 %v963, %v966
      %v968 = vrot.slane %v967, 4
      %v970 = vshll.u32 %v874, 16
      %v972 = vrot.slane %v970, 5
      %v973 = vsel %vm903, %v968, %v972
      %v975 = vshrl.u32 %v875, 16
      %v977 = vrot.slane %v975, 4
      %v978 = vshll.u32 %v875, 16
      %v980 = vrot.slane %v978, 5
      %v981 = vor.u32 %v977, %v980
      %v982 = vrot.slane %v981, 4
      %v984 = vshll.u32 %v876, 16
      %v986 = vrot.slane %v984, 5
      %v987 = vsel %vm903, %v982, %v986
      %v989 = vshrl.u32 %v877, 16
      %v991 = vrot.slane %v989, 4
      %v992 = vshll.u32 %v877, 16
      %v994 = vrot.slane %v992, 5
      %v995 = vor.u32 %v991, %v994
      %v996 = vrot.slane %v995, 4
      %v998 = vshll.u32 %v878, 16
      %v1000 = vrot.slane %v998, 5
      %v1001 = vsel %vm903, %v996, %v1000
      %v1003 = vshrl.u32 %v879, 16
      %v1005 = vrot.slane %v1003, 4
      %v1006 = vshll.u32 %v879, 16
      %v1008 = vrot.slane %v1006, 5
      %v1009 = vor.u32 %v1005, %v1008
      %v1010 = vrot.slane %v1009, 4
      %v1012 = vshll.u32 %v880, 16
      %v1014 = vrot.slane %v1012, 5
      %v1015 = vsel %vm903, %v1010, %v1014
      %v1017 = vshrl.u32 %v881, 16
      %v1019 = vrot.slane %v1017, 4
      %v1020 = vshll.u32 %v881, 16
      %v1022 = vrot.slane %v1020, 5
      %v1023 = vor.u32 %v1019, %v1022
      %v1024 = vrot.slane %v1023, 4
      %v1026 = vshll.u32 %v882, 16
      %v1028 = vrot.slane %v1026, 5
      %v1029 = vsel %vm903, %v1024, %v1028
      %v1031 = vshrl.u32 %v883, 16
      %v1033 = vrot.slane %v1031, 4
      %v1034 = vshll.u32 %v883, 16
      %v1036 = vrot.slane %v1034, 5
      %v1037 = vor.u32 %v1033, %v1036
      %v1038 = vrot.slane %v1037, 4
      %v1040 = vshll.u32 %v884, 16
      %v1042 = vrot.slane %v1040, 5
      %v1043 = vsel %vm903, %v1038, %v1042
      %v1045 = vshrl.u32 %v885, 16
      %v1047 = vrot.slane %v1045, 4
      %v1048 = vshll.u32 %v885, 16
      %v1050 = vrot.slane %v1048, 5
      %v1051 = vor.u32 %v1047, %v1050
      %v1052 = vrot.slane %v1051, 4
      %v1054 = vshll.u32 %v886, 16
      %v1056 = vrot.slane %v1054, 5
      %v1057 = vsel %vm903, %v1052, %v1056
      %v1059 = vshrl.u32 %v887, 16
      %v1061 = vrot.slane %v1059, 4
      %v1062 = vshll.u32 %v887, 16
      %v1064 = vrot.slane %v1062, 5
      %v1065 = vor.u32 %v1061, %v1064
      %v1066 = vrot.slane %v1065, 4
      %v1068 = vshll.u32 %v888, 16
      %v1070 = vrot.slane %v1068, 5
      %v1071 = vsel %vm903, %v1066, %v1070
      %v1073 = vshrl.u32 %v889, 16
      %v1075 = vrot.slane %v1073, 4
      %v1076 = vshll.u32 %v889, 16
      %v1078 = vrot.slane %v1076, 5
      %v1079 = vor.u32 %v1075, %v1078
      %v1080 = vrot.slane %v1079, 4
      %v1082 = vshll.u32 %v890, 16
      %v1084 = vrot.slane %v1082, 5
      %v1085 = vsel %vm903, %v1080, %v1084
      %v1087 = vshrl.u32 %v891, 16
      %v1089 = vrot.slane %v1087, 4
      %v1090 = vshll.u32 %v891, 16
      %v1092 = vrot.slane %v1090, 5
      %v1093 = vor.u32 %v1089, %v1092
      %v1094 = vrot.slane %v1093, 4
      %v1096 = vshll.u32 %v892, 16
      %v1098 = vrot.slane %v1096, 5
      %v1099 = vsel %vm903, %v1094, %v1098
      %v1101 = vshrl.u32 %v893, 16
      %v1103 = vrot.slane %v1101, 4
      %v1104 = vshll.u32 %v893, 16
      %v1106 = vrot.slane %v1104, 5
      %v1107 = vor.u32 %v1103, %v1106
      %v1108 = vrot.slane %v1107, 4
      %v1110 = vshll.u32 %v894, 16
      %v1112 = vrot.slane %v1110, 5
      %v1113 = vsel %vm903, %v1108, %v1112
      %v1115 = vshrl.u32 %v895, 16
      %v1117 = vrot.slane %v1115, 4
      %v1118 = vshll.u32 %v895, 16
      %v1120 = vrot.slane %v1118, 5
      %v1121 = vor.u32 %v1117, %v1120
      %v1122 = vrot.slane %v1121, 4
      %v1124 = vshll.u32 %v896, 16
      %v1126 = vrot.slane %v1124, 5
      %v1127 = vsel %vm903, %v1122, %v1126
      %vm1160 = vcmask 1042432
      %vm1161 = vcmask 1046532
      %vm1162 = vmor %vm1160, %vm1161
      %v1163 = vrot.slane %v865, 5
      %v1164 = vrot.slane %v1163, 4
      %v1165 = vrot.slane %v866, 5
      %v1166 = vsel %vm1162, %v1164, %v1165
      %v1167 = vrot.slane %v867, 5
      %v1168 = vrot.slane %v1167, 4
      %v1169 = vrot.slane %v868, 5
      %v1170 = vsel %vm1162, %v1168, %v1169
      %v1171 = vrot.slane %v869, 5
      %v1172 = vrot.slane %v1171, 4
      %v1173 = vrot.slane %v870, 5
      %v1174 = vsel %vm1162, %v1172, %v1173
      %v1175 = vrot.slane %v871, 5
      %v1176 = vrot.slane %v1175, 4
      %v1177 = vrot.slane %v872, 5
      %v1178 = vsel %vm1162, %v1176, %v1177
      %v1179 = vrot.slane %v873, 5
      %v1180 = vrot.slane %v1179, 4
      %v1181 = vrot.slane %v874, 5
      %v1182 = vsel %vm1162, %v1180, %v1181
      %v1183 = vrot.slane %v875, 5
      %v1184 = vrot.slane %v1183, 4
      %v1185 = vrot.slane %v876, 5
      %v1186 = vsel %vm1162, %v1184, %v1185
      %v1187 = vrot.slane %v877, 5
      %v1188 = vrot.slane %v1187, 4
      %v1189 = vrot.slane %v878, 5
      %v1190 = vsel %vm1162, %v1188, %v1189
      %v1191 = vrot.slane %v879, 5
      %v1192 = vrot.slane %v1191, 4
      %v1193 = vrot.slane %v880, 5
      %v1194 = vsel %vm1162, %v1192, %v1193
      %v1195 = vrot.slane %v881, 5
      %v1196 = vrot.slane %v1195, 4
      %v1197 = vrot.slane %v882, 5
      %v1198 = vsel %vm1162, %v1196, %v1197
      %v1199 = vrot.slane %v883, 5
      %v1200 = vrot.slane %v1199, 4
      %v1201 = vrot.slane %v884, 5
      %v1202 = vsel %vm1162, %v1200, %v1201
      %v1203 = vrot.slane %v885, 5
      %v1204 = vrot.slane %v1203, 4
      %v1205 = vrot.slane %v886, 5
      %v1206 = vsel %vm1162, %v1204, %v1205
      %v1207 = vrot.slane %v887, 5
      %v1208 = vrot.slane %v1207, 4
      %v1209 = vrot.slane %v888, 5
      %v1210 = vsel %vm1162, %v1208, %v1209
      %v1211 = vrot.slane %v889, 5
      %v1212 = vrot.slane %v1211, 4
      %v1213 = vrot.slane %v890, 5
      %v1214 = vsel %vm1162, %v1212, %v1213
      %v1215 = vrot.slane %v891, 5
      %v1216 = vrot.slane %v1215, 4
      %v1217 = vrot.slane %v892, 5
      %v1218 = vsel %vm1162, %v1216, %v1217
      %v1219 = vrot.slane %v893, 5
      %v1220 = vrot.slane %v1219, 4
      %v1221 = vrot.slane %v894, 5
      %v1222 = vsel %vm1162, %v1220, %v1221
      %v1223 = vrot.slane %v895, 5
      %v1224 = vrot.slane %v1223, 4
      %v1225 = vrot.slane %v896, 5
      %v1226 = vsel %vm1162, %v1224, %v1225
      %v1228 = vshrl.u32 %v897, 16
      %v1230 = vrot.slane %v1228, 4
      %v1231 = vshll.u32 %v897, 16
      %v1233 = vrot.slane %v1231, 5
      %v1234 = vor.u32 %v1230, %v1233
      %v1235 = vrot.slane %v1234, 4
      %v1237 = vshll.u32 %v898, 16
      %v1239 = vrot.slane %v1237, 5
      %v1240 = vsel %vm903, %v1235, %v1239
      %v1243 = vrot.slane %v897, 5
      %v1244 = vrot.slane %v1243, 4
      %v1245 = vrot.slane %v898, 5
      %v1246 = vsel %vm1162, %v1244, %v1245
      %v1248 = vshrl.u32 %v899, 16
      %v1250 = vrot.slane %v1248, 4
      %v1251 = vshll.u32 %v899, 16
      %v1253 = vrot.slane %v1251, 5
      %v1254 = vor.u32 %v1250, %v1253
      %v1255 = vrot.slane %v1254, 4
      %v1257 = vshll.u32 %v900, 16
      %v1259 = vrot.slane %v1257, 5
      %v1260 = vsel %vm903, %v1255, %v1259
      %v1263 = vrot.slane %v899, 5
      %v1264 = vrot.slane %v1263, 4
      %v1265 = vrot.slane %v900, 5
      %v1266 = vsel %vm1162, %v1264, %v1265
      %v1267 = vunpack.c.l.b16 %v865
      %v1268 = vunpack.c.l.b16 %v867
      %v1269 = vunpack.c.l.b16 %v869
      %v1270 = vunpack.c.l.b16 %v871
      %v1271 = vunpack.c.l.b16 %v873
      %v1272 = vunpack.c.l.b16 %v875
      %v1273 = vunpack.c.l.b16 %v877
      %v1274 = vunpack.c.l.b16 %v879
      %v1275 = vunpack.c.l.b16 %v881
      %v1276 = vunpack.c.l.b16 %v883
      %v1277 = vunpack.c.l.b16 %v885
      %v1278 = vunpack.c.l.b16 %v887
      %v1279 = vunpack.c.l.b16 %v889
      %v1280 = vunpack.c.l.b16 %v891
      %v1281 = vunpack.c.l.b16 %v893
      %v1282 = vunpack.c.l.b16 %v895
      %v1283 = vpack.c.b16 %v1268, %v1267
      %v1284 = vpack.c.b16 %v1270, %v1269
      %v1285 = vpack.c.b16 %v1272, %v1271
      %v1286 = vpack.c.b16 %v1274, %v1273
      %v1287 = vpack.c.b16 %v1276, %v1275
      %v1288 = vpack.c.b16 %v1278, %v1277
      %v1289 = vpack.c.b16 %v1280, %v1279
      %v1290 = vpack.c.b16 %v1282, %v1281
      %1291 = vrot.lane.b32.xlu0 %v1283, 124
      %v1292 = vpop.permute.xlu0 %1291
      %1293 = vrot.lane.b32.xlu0 %v1284, 124
      %v1294 = vpop.permute.xlu0 %1293
      %1295 = vrot.lane.b32.xlu0 %v1285, 124
      %v1296 = vpop.permute.xlu0 %1295
      %1297 = vrot.lane.b32.xlu0 %v1286, 124
      %v1298 = vpop.permute.xlu0 %1297
      %1299 = vrot.lane.b32.xlu0 %v1287, 124
      %v1300 = vpop.permute.xlu0 %1299
      %1301 = vrot.lane.b32.xlu0 %v1288, 124
      %v1302 = vpop.permute.xlu0 %1301
      %1303 = vrot.lane.b32.xlu0 %v1289, 124
      %v1304 = vpop.permute.xlu0 %1303
      %1305 = vrot.lane.b32.xlu0 %v1290, 124
      %v1306 = vpop.permute.xlu0 %1305
      %v1307 = vunpack.c.l.b16 %v917
      %v1308 = vunpack.c.l.b16 %v931
      %v1309 = vunpack.c.l.b16 %v945
      %v1310 = vunpack.c.l.b16 %v959
      %v1311 = vunpack.c.l.b16 %v973
      %v1312 = vunpack.c.l.b16 %v987
      %v1313 = vunpack.c.l.b16 %v1001
      %v1314 = vunpack.c.l.b16 %v1015
      %v1315 = vunpack.c.l.b16 %v1029
      %v1316 = vunpack.c.l.b16 %v1043
      %v1317 = vunpack.c.l.b16 %v1057
      %v1318 = vunpack.c.l.b16 %v1071
      %v1319 = vunpack.c.l.b16 %v1085
      %v1320 = vunpack.c.l.b16 %v1099
      %v1321 = vunpack.c.l.b16 %v1113
      %v1322 = vunpack.c.l.b16 %v1127
      %v1323 = vpack.c.b16 %v1308, %v1307
      %v1324 = vpack.c.b16 %v1310, %v1309
      %v1325 = vpack.c.b16 %v1312, %v1311
      %v1326 = vpack.c.b16 %v1314, %v1313
      %v1327 = vpack.c.b16 %v1316, %v1315
      %v1328 = vpack.c.b16 %v1318, %v1317
      %v1329 = vpack.c.b16 %v1320, %v1319
      %v1330 = vpack.c.b16 %v1322, %v1321
      %1331 = vrot.lane.b32.xlu0 %v1323, 4
      %v1332 = vpop.permute.xlu0 %1331
      %1333 = vrot.lane.b32.xlu0 %v1324, 4
      %v1334 = vpop.permute.xlu0 %1333
      %1335 = vrot.lane.b32.xlu0 %v1325, 4
      %v1336 = vpop.permute.xlu0 %1335
      %1337 = vrot.lane.b32.xlu0 %v1326, 4
      %v1338 = vpop.permute.xlu0 %1337
      %1339 = vrot.lane.b32.xlu0 %v1327, 4
      %v1340 = vpop.permute.xlu0 %1339
      %1341 = vrot.lane.b32.xlu0 %v1328, 4
      %v1342 = vpop.permute.xlu0 %1341
      %1343 = vrot.lane.b32.xlu0 %v1329, 4
      %v1344 = vpop.permute.xlu0 %1343
      %1345 = vrot.lane.b32.xlu0 %v1330, 4
      %v1346 = vpop.permute.xlu0 %1345
      %v1347 = vunpack.c.l.b16 %v1166
      %v1348 = vunpack.c.l.b16 %v1170
      %v1349 = vunpack.c.l.b16 %v1174
      %v1350 = vunpack.c.l.b16 %v1178
      %v1351 = vunpack.c.l.b16 %v1182
      %v1352 = vunpack.c.l.b16 %v1186
      %v1353 = vunpack.c.l.b16 %v1190
      %v1354 = vunpack.c.l.b16 %v1194
      %v1355 = vunpack.c.l.b16 %v1198
      %v1356 = vunpack.c.l.b16 %v1202
      %v1357 = vunpack.c.l.b16 %v1206
      %v1358 = vunpack.c.l.b16 %v1210
      %v1359 = vunpack.c.l.b16 %v1214
      %v1360 = vunpack.c.l.b16 %v1218
      %v1361 = vunpack.c.l.b16 %v1222
      %v1362 = vunpack.c.l.b16 %v1226
      %v1363 = vpack.c.b16 %v1348, %v1347
      %v1364 = vpack.c.b16 %v1350, %v1349
      %v1365 = vpack.c.b16 %v1352, %v1351
      %v1366 = vpack.c.b16 %v1354, %v1353
      %v1367 = vpack.c.b16 %v1356, %v1355
      %v1368 = vpack.c.b16 %v1358, %v1357
      %v1369 = vpack.c.b16 %v1360, %v1359
      %v1370 = vpack.c.b16 %v1362, %v1361
      %1371 = vrot.lane.b32.xlu0 %v1363, 12
      %v1372 = vpop.permute.xlu0 %1371
      %1373 = vrot.lane.b32.xlu0 %v1364, 12
      %v1374 = vpop.permute.xlu0 %1373
      %1375 = vrot.lane.b32.xlu0 %v1365, 12
      %v1376 = vpop.permute.xlu0 %1375
      %1377 = vrot.lane.b32.xlu0 %v1366, 12
      %v1378 = vpop.permute.xlu0 %1377
      %1379 = vrot.lane.b32.xlu0 %v1367, 12
      %v1380 = vpop.permute.xlu0 %1379
      %1381 = vrot.lane.b32.xlu0 %v1368, 12
      %v1382 = vpop.permute.xlu0 %1381
      %1383 = vrot.lane.b32.xlu0 %v1369, 12
      %v1384 = vpop.permute.xlu0 %1383
      %1385 = vrot.lane.b32.xlu0 %v1370, 12
      %v1386 = vpop.permute.xlu0 %1385
      %v1387 = vunpack.c.l.b16 %v897
      %v1388 = vpack.c.b16 %v1269, %v1268
      %v1389 = vpack.c.b16 %v1271, %v1270
      %v1390 = vpack.c.b16 %v1273, %v1272
      %v1391 = vpack.c.b16 %v1275, %v1274
      %v1392 = vpack.c.b16 %v1277, %v1276
      %v1393 = vpack.c.b16 %v1279, %v1278
      %v1394 = vpack.c.b16 %v1281, %v1280
      %v1395 = vpack.c.b16 %v1387, %v1282
      %1396 = vrot.lane.b32.xlu0 %v1388, 12
      %v1397 = vpop.permute.xlu0 %1396
      %1398 = vrot.lane.b32.xlu0 %v1389, 12
      %v1399 = vpop.permute.xlu0 %1398
      %1400 = vrot.lane.b32.xlu0 %v1390, 12
      %v1401 = vpop.permute.xlu0 %1400
      %1402 = vrot.lane.b32.xlu0 %v1391, 12
      %v1403 = vpop.permute.xlu0 %1402
      %1404 = vrot.lane.b32.xlu0 %v1392, 12
      %v1405 = vpop.permute.xlu0 %1404
      %1406 = vrot.lane.b32.xlu0 %v1393, 12
      %v1407 = vpop.permute.xlu0 %1406
      %1408 = vrot.lane.b32.xlu0 %v1394, 12
      %v1409 = vpop.permute.xlu0 %1408
      %1410 = vrot.lane.b32.xlu0 %v1395, 12
      %v1411 = vpop.permute.xlu0 %1410
      %v1412 = vunpack.c.l.b16 %v1240
      %v1413 = vpack.c.b16 %v1309, %v1308
      %v1414 = vpack.c.b16 %v1311, %v1310
      %v1415 = vpack.c.b16 %v1313, %v1312
      %v1416 = vpack.c.b16 %v1315, %v1314
      %v1417 = vpack.c.b16 %v1317, %v1316
      %v1418 = vpack.c.b16 %v1319, %v1318
      %v1419 = vpack.c.b16 %v1321, %v1320
      %v1420 = vpack.c.b16 %v1412, %v1322
      %1421 = vrot.lane.b32.xlu0 %v1413, 20
      %v1422 = vpop.permute.xlu0 %1421
      %1423 = vrot.lane.b32.xlu0 %v1414, 20
      %v1424 = vpop.permute.xlu0 %1423
      %1425 = vrot.lane.b32.xlu0 %v1415, 20
      %v1426 = vpop.permute.xlu0 %1425
      %1427 = vrot.lane.b32.xlu0 %v1416, 20
      %v1428 = vpop.permute.xlu0 %1427
      %1429 = vrot.lane.b32.xlu0 %v1417, 20
      %v1430 = vpop.permute.xlu0 %1429
      %1431 = vrot.lane.b32.xlu0 %v1418, 20
      %v1432 = vpop.permute.xlu0 %1431
      %1433 = vrot.lane.b32.xlu0 %v1419, 20
      %v1434 = vpop.permute.xlu0 %1433
      %1435 = vrot.lane.b32.xlu0 %v1420, 20
      %v1436 = vpop.permute.xlu0 %1435
      %v1437 = vunpack.c.l.b16 %v1246
      %v1438 = vpack.c.b16 %v1349, %v1348
      %v1439 = vpack.c.b16 %v1351, %v1350
      %v1440 = vpack.c.b16 %v1353, %v1352
      %v1441 = vpack.c.b16 %v1355, %v1354
      %v1442 = vpack.c.b16 %v1357, %v1356
      %v1443 = vpack.c.b16 %v1359, %v1358
      %v1444 = vpack.c.b16 %v1361, %v1360
      %v1445 = vpack.c.b16 %v1437, %v1362
      %1446 = vrot.lane.b32.xlu0 %v1438, 28
      %v1447 = vpop.permute.xlu0 %1446
      %1448 = vrot.lane.b32.xlu0 %v1439, 28
      %v1449 = vpop.permute.xlu0 %1448
      %1450 = vrot.lane.b32.xlu0 %v1440, 28
      %v1451 = vpop.permute.xlu0 %1450
      %1452 = vrot.lane.b32.xlu0 %v1441, 28
      %v1453 = vpop.permute.xlu0 %1452
      %1454 = vrot.lane.b32.xlu0 %v1442, 28
      %v1455 = vpop.permute.xlu0 %1454
      %1456 = vrot.lane.b32.xlu0 %v1443, 28
      %v1457 = vpop.permute.xlu0 %1456
      %1458 = vrot.lane.b32.xlu0 %v1444, 28
      %v1459 = vpop.permute.xlu0 %1458
      %1460 = vrot.lane.b32.xlu0 %v1445, 28
      %v1461 = vpop.permute.xlu0 %1460
      %v1462 = vunpack.c.l.b16 %v899
      %v1463 = vpack.c.b16 %v1462, %v1387
      %1464 = vrot.lane.b32.xlu0 %v1284, 28
      %v1465 = vpop.permute.xlu0 %1464
      %1466 = vrot.lane.b32.xlu0 %v1285, 28
      %v1467 = vpop.permute.xlu0 %1466
      %1468 = vrot.lane.b32.xlu0 %v1286, 28
      %v1469 = vpop.permute.xlu0 %1468
      %1470 = vrot.lane.b32.xlu0 %v1287, 28
      %v1471 = vpop.permute.xlu0 %1470
      %1472 = vrot.lane.b32.xlu0 %v1288, 28
      %v1473 = vpop.permute.xlu0 %1472
      %1474 = vrot.lane.b32.xlu0 %v1289, 28
      %v1475 = vpop.permute.xlu0 %1474
      %1476 = vrot.lane.b32.xlu0 %v1290, 28
      %v1477 = vpop.permute.xlu0 %1476
      %1478 = vrot.lane.b32.xlu0 %v1463, 28
      %v1479 = vpop.permute.xlu0 %1478
      %v1480 = vunpack.c.l.b16 %v1260
      %v1481 = vpack.c.b16 %v1480, %v1412
      %1482 = vrot.lane.b32.xlu0 %v1324, 36
      %v1483 = vpop.permute.xlu0 %1482
      %1484 = vrot.lane.b32.xlu0 %v1325, 36
      %v1485 = vpop.permute.xlu0 %1484
      %1486 = vrot.lane.b32.xlu0 %v1326, 36
      %v1487 = vpop.permute.xlu0 %1486
      %1488 = vrot.lane.b32.xlu0 %v1327, 36
      %v1489 = vpop.permute.xlu0 %1488
      %1490 = vrot.lane.b32.xlu0 %v1328, 36
      %v1491 = vpop.permute.xlu0 %1490
      %1492 = vrot.lane.b32.xlu0 %v1329, 36
      %v1493 = vpop.permute.xlu0 %1492
      %1494 = vrot.lane.b32.xlu0 %v1330, 36
      %v1495 = vpop.permute.xlu0 %1494
      %1496 = vrot.lane.b32.xlu0 %v1481, 36
      %v1497 = vpop.permute.xlu0 %1496
      %v1498 = vunpack.c.l.b16 %v1266
      %v1499 = vpack.c.b16 %v1498, %v1437
      %1500 = vrot.lane.b32.xlu0 %v1364, 44
      %v1501 = vpop.permute.xlu0 %1500
      %1502 = vrot.lane.b32.xlu0 %v1365, 44
      %v1503 = vpop.permute.xlu0 %1502
      %1504 = vrot.lane.b32.xlu0 %v1366, 44
      %v1505 = vpop.permute.xlu0 %1504
      %1506 = vrot.lane.b32.xlu0 %v1367, 44
      %v1507 = vpop.permute.xlu0 %1506
      %1508 = vrot.lane.b32.xlu0 %v1368, 44
      %v1509 = vpop.permute.xlu0 %1508
      %1510 = vrot.lane.b32.xlu0 %v1369, 44
      %v1511 = vpop.permute.xlu0 %1510
      %1512 = vrot.lane.b32.xlu0 %v1370, 44
      %v1513 = vpop.permute.xlu0 %1512
      %1514 = vrot.lane.b32.xlu0 %v1499, 44
      %v1515 = vpop.permute.xlu0 %1514
      %v1518 = vsel %vm370, %v1292, %v1332
      %v1521 = vsel %vm370, %v1294, %v1334
      %v1524 = vsel %vm370, %v1296, %v1336
      %v1527 = vsel %vm370, %v1298, %v1338
      %v1530 = vsel %vm370, %v1300, %v1340
      %v1533 = vsel %vm370, %v1302, %v1342
      %v1536 = vsel %vm370, %v1304, %v1344
      %v1539 = vsel %vm370, %v1306, %v1346
      %vm1540 = vcmask 64512
      %v1541 = vsel %vm1540, %v1518, %v1332
      %v1542 = vsel %vm1540, %v1521, %v1334
      %v1543 = vsel %vm1540, %v1524, %v1336
      %v1544 = vsel %vm1540, %v1527, %v1338
      %v1545 = vsel %vm1540, %v1530, %v1340
      %v1546 = vsel %vm1540, %v1533, %v1342
      %v1547 = vsel %vm1540, %v1536, %v1344
      %v1548 = vsel %vm1540, %v1539, %v1346
      %vm1549 = vcmask 97280
      %v1551 = vsel %vm1549, %v1541, %v1372
      %v1553 = vsel %vm1549, %v1542, %v1374
      %v1555 = vsel %vm1549, %v1543, %v1376
      %v1557 = vsel %vm1549, %v1544, %v1378
      %v1559 = vsel %vm1549, %v1545, %v1380
      %v1561 = vsel %vm1549, %v1546, %v1382
      %v1563 = vsel %vm1549, %v1547, %v1384
      %v1565 = vsel %vm1549, %v1548, %v1386
      %vm1566 = vcmask 130048
      %v1568 = vsel %vm1566, %v1551, %v1397
      %v1570 = vsel %vm1566, %v1553, %v1399
      %v1572 = vsel %vm1566, %v1555, %v1401
      %v1574 = vsel %vm1566, %v1557, %v1403
      %v1576 = vsel %vm1566, %v1559, %v1405
      %v1578 = vsel %vm1566, %v1561, %v1407
      %v1580 = vsel %vm1566, %v1563, %v1409
      %v1582 = vsel %vm1566, %v1565, %v1411
      %vm1583 = vcmask 162816
      %v1585 = vsel %vm1583, %v1568, %v1422
      %v1587 = vsel %vm1583, %v1570, %v1424
      %v1589 = vsel %vm1583, %v1572, %v1426
      %v1591 = vsel %vm1583, %v1574, %v1428
      %v1593 = vsel %vm1583, %v1576, %v1430
      %v1595 = vsel %vm1583, %v1578, %v1432
      %v1597 = vsel %vm1583, %v1580, %v1434
      %v1599 = vsel %vm1583, %v1582, %v1436
      %vm1600 = vcmask 195584
      %v1601 = vsel %vm1600, %v1585, %v1422
      %v1602 = vsel %vm1600, %v1587, %v1424
      %v1603 = vsel %vm1600, %v1589, %v1426
      %v1604 = vsel %vm1600, %v1591, %v1428
      %v1605 = vsel %vm1600, %v1593, %v1430
      %v1606 = vsel %vm1600, %v1595, %v1432
      %v1607 = vsel %vm1600, %v1597, %v1434
      %v1608 = vsel %vm1600, %v1599, %v1436
      %vm1609 = vcmask 228352
      %v1611 = vsel %vm1609, %v1601, %v1447
      %v1613 = vsel %vm1609, %v1602, %v1449
      %v1615 = vsel %vm1609, %v1603, %v1451
      %v1617 = vsel %vm1609, %v1604, %v1453
      %v1619 = vsel %vm1609, %v1605, %v1455
      %v1621 = vsel %vm1609, %v1606, %v1457
      %v1623 = vsel %vm1609, %v1607, %v1459
      %v1625 = vsel %vm1609, %v1608, %v1461
      %vm1626 = vcmask 261120
      %v1628 = vsel %vm1626, %v1611, %v1465
      %v1630 = vsel %vm1626, %v1613, %v1467
      %v1632 = vsel %vm1626, %v1615, %v1469
      %v1634 = vsel %vm1626, %v1617, %v1471
      %v1636 = vsel %vm1626, %v1619, %v1473
      %v1638 = vsel %vm1626, %v1621, %v1475
      %v1640 = vsel %vm1626, %v1623, %v1477
      %v1642 = vsel %vm1626, %v1625, %v1479
      %vm1643 = vcmask 293888
      %v1645 = vsel %vm1643, %v1628, %v1483
      %v1647 = vsel %vm1643, %v1630, %v1485
      %v1649 = vsel %vm1643, %v1632, %v1487
      %v1651 = vsel %vm1643, %v1634, %v1489
      %v1653 = vsel %vm1643, %v1636, %v1491
      %v1655 = vsel %vm1643, %v1638, %v1493
      %v1657 = vsel %vm1643, %v1640, %v1495
      %v1659 = vsel %vm1643, %v1642, %v1497
      %vm1660 = vcmask 326656
      %v1661 = vsel %vm1660, %v1645, %v1483
      %v1662 = vsel %vm1660, %v1647, %v1485
      %v1663 = vsel %vm1660, %v1649, %v1487
      %v1664 = vsel %vm1660, %v1651, %v1489
      %v1665 = vsel %vm1660, %v1653, %v1491
      %v1666 = vsel %vm1660, %v1655, %v1493
      %v1667 = vsel %vm1660, %v1657, %v1495
      %v1668 = vsel %vm1660, %v1659, %v1497
      %vm1669 = vcmask 359424
      %v1671 = vsel %vm1669, %v1661, %v1501
      %v1673 = vsel %vm1669, %v1662, %v1503
      %v1675 = vsel %vm1669, %v1663, %v1505
      %v1677 = vsel %vm1669, %v1664, %v1507
      %v1679 = vsel %vm1669, %v1665, %v1509
      %v1681 = vsel %vm1669, %v1666, %v1511
      %v1683 = vsel %vm1669, %v1667, %v1513
      %v1685 = vsel %vm1669, %v1668, %v1515
      %v1686 = vld [vmem:[%s1] sm:$0xf]
      %v1687 = vld [vmem:[%s1 + $0x4] sm:$0xf]
      %v1688 = vld [vmem:[%s1 + $0x8] sm:$0xf]
      %v1689 = vld [vmem:[%s1 + $0xc] sm:$0xf]
      %v1690 = vld [vmem:[%s1 + $0x10] sm:$0xf]
      %v1691 = vld [vmem:[%s1 + $0x14] sm:$0xf]
      %v1698 = vunpack.c.l.b16 %v1686
      %v1699 = vunpack.c.l.b16 %v1687
      %v1700 = vunpack.c.l.b16 %v1688
      %v1701 = vunpack.c.l.b16 %v1689
      %v1702 = vunpack.c.l.b16 %v1690
      %v1703 = vunpack.c.l.b16 %v1691
      %v1704 = vpack.c.b16 %v1699, %v1698
      %v1705 = vpack.c.b16 %v1701, %v1700
      %v1706 = vpack.c.b16 %v1703, %v1702
      %vm1710 = vcmask 392192
      %v1711 = vsel %vm1710, %v1671, 0
      %v1713 = vsel %vm1710, %v1673, 0
      %v1715 = vsel %vm1710, %v1675, 0
      %v1717 = vsel %vm1710, %v1677, 0
      %v1719 = vsel %vm1710, %v1679, 0
      %v1721 = vsel %vm1710, %v1681, 0
      %v1723 = vsel %vm1710, %v1683, 0
      %v1725 = vsel %vm1710, %v1685, 0
      %1727 = vmatprep.subr.bf16.mxu0 0
      %1728 = vmatpush1.bf16.msra.mxu0 %v1704
      %1729 = vmatprep.subr.bf16.mxu0 0
      %1730 = vmatpush1.bf16.msra.mxu0 %v1705
      %1731 = vmatprep.subr.bf16.mxu0 0
      %1732 = vmatpush1.bf16.msra.mxu0 %v1706
      %1733 = vmatprep.subr.bf16.mxu0 0
      %1734 = vmatpush1.bf16.msra.mxu0 0
      %1735 = vmatprep.subr.bf16.mxu0 0
      %1736 = vmatpush1.bf16.msra.mxu0 0
      %1737 = vmatprep.subr.bf16.mxu0 0
      %1738 = vmatpush1.bf16.msra.mxu0 0
      %1739 = vmatprep.subr.bf16.mxu0 0
      %1740 = vmatpush1.bf16.msra.mxu0 0
      %1741 = vmatprep.subr.bf16.mxu0 0
      %1742 = vmatpush1.bf16.msra.mxu0 0
      %1743 = vmatprep.subr.bf16.mxu0 0
      %1744 = vmatpush1.bf16.msra.mxu0 0
      %1745 = vmatprep.subr.bf16.mxu0 0
      %1746 = vmatpush1.bf16.msra.mxu0 0
      %1747 = vmatprep.subr.bf16.mxu0 0
      %1748 = vmatpush1.bf16.msra.mxu0 0
      %1749 = vmatprep.subr.bf16.mxu0 0
      %1750 = vmatpush1.bf16.msra.mxu0 0
      %1751 = vmatprep.subr.bf16.mxu0 0
      %1752 = vmatpush1.bf16.msra.mxu0 0
      %1753 = vmatprep.subr.bf16.mxu0 0
      %1754 = vmatpush1.bf16.msra.mxu0 0
      %1755 = vmatprep.subr.bf16.mxu0 0
      %1756 = vmatpush1.bf16.msra.mxu0 0
      %1757 = vmatprep.subr.bf16.mxu0 0
      %1758 = vmatpush1.bf16.msra.mxu0 0
      %1759 = vmatprep.mubr.bf16.mxu0 0
      %1760 = vmatmul.mubr.bf16.gmra.mrb[0].mxu0 %v1711
      %v1761 = vpop.f32.mrb[0].mxu0
      %v1762 = vadd.f32 0.0, %v1761
      %v1763 = vpop.f32.mrb[0].mxu0
      %v1764 = vpop.f32.mrb[0].mxu0
      %v1765 = vadd.f32 0.0, %v1764
      %v1766 = vpop.f32.mrb[0].mxu0
      %1767 = vmatprep.mubr.bf16.mxu0 0
      %1768 = vmatmul.mubr.bf16.gmra.mrb[0].mxu0 %v1713
      %v1769 = vpop.f32.mrb[0].mxu0
      %v1770 = vadd.f32 0.0, %v1769
      %v1771 = vpop.f32.mrb[0].mxu0
      %v1772 = vpop.f32.mrb[0].mxu0
      %v1773 = vadd.f32 0.0, %v1772
      %v1774 = vpop.f32.mrb[0].mxu0
      %1775 = vmatprep.mubr.bf16.mxu0 0
      %1776 = vmatmul.mubr.bf16.gmra.mrb[0].mxu0 %v1715
      %v1777 = vpop.f32.mrb[0].mxu0
      %v1778 = vadd.f32 0.0, %v1777
      %v1779 = vpop.f32.mrb[0].mxu0
      %v1780 = vpop.f32.mrb[0].mxu0
      %v1781 = vadd.f32 0.0, %v1780
      %v1782 = vpop.f32.mrb[0].mxu0
      %1783 = vmatprep.mubr.bf16.mxu0 0
      %1784 = vmatmul.mubr.bf16.gmra.mrb[0].mxu0 %v1717
      %v1785 = vpop.f32.mrb[0].mxu0
      %v1786 = vadd.f32 0.0, %v1785
      %v1787 = vpop.f32.mrb[0].mxu0
      %v1788 = vpop.f32.mrb[0].mxu0
      %v1789 = vadd.f32 0.0, %v1788
      %v1790 = vpop.f32.mrb[0].mxu0
      %1791 = vmatprep.mubr.bf16.mxu0 0
      %1792 = vmatmul.mubr.bf16.gmra.mrb[0].mxu0 %v1719
      %v1793 = vpop.f32.mrb[0].mxu0
      %v1794 = vadd.f32 0.0, %v1793
      %v1795 = vpop.f32.mrb[0].mxu0
      %v1796 = vpop.f32.mrb[0].mxu0
      %v1797 = vadd.f32 0.0, %v1796
      %v1798 = vpop.f32.mrb[0].mxu0
      %1799 = vmatprep.mubr.bf16.mxu0 0
      %1800 = vmatmul.mubr.bf16.gmra.mrb[0].mxu0 %v1721
      %v1801 = vpop.f32.mrb[0].mxu0
      %v1802 = vadd.f32 0.0, %v1801
      %v1803 = vpop.f32.mrb[0].mxu0
      %v1804 = vpop.f32.mrb[0].mxu0
      %v1805 = vadd.f32 0.0, %v1804
      %v1806 = vpop.f32.mrb[0].mxu0
      %1807 = vmatprep.mubr.bf16.mxu0 0
      %1808 = vmatmul.mubr.bf16.gmra.mrb[0].mxu0 %v1723
      %v1809 = vpop.f32.mrb[0].mxu0
      %v1810 = vadd.f32 0.0, %v1809
      %v1811 = vpop.f32.mrb[0].mxu0
      %v1812 = vpop.f32.mrb[0].mxu0
      %v1813 = vadd.f32 0.0, %v1812
      %v1814 = vpop.f32.mrb[0].mxu0
      %1815 = vmatprep.mubr.bf16.mxu0 0
      %1816 = vmatmul.mubr.bf16.gmra.mrb[0].mxu0 %v1725
      %v1817 = vpop.f32.mrb[0].mxu0
      %v1818 = vadd.f32 0.0, %v1817
      %v1819 = vpop.f32.mrb[0].mxu0
      %v1820 = vpop.f32.mrb[0].mxu0
      %v1821 = vadd.f32 0.0, %v1820
      %v1822 = vpop.f32.mrb[0].mxu0
      %1823 = vdwg.mxu0
      %v1824 = vadd.f32 %v1762, %v1765
      %v1825 = vadd.f32 %v1770, %v1773
      %v1826 = vadd.f32 %v1778, %v1781
      %v1827 = vadd.f32 %v1786, %v1789
      %v1828 = vadd.f32 %v1794, %v1797
      %v1829 = vadd.f32 %v1802, %v1805
      %v1830 = vadd.f32 %v1810, %v1813
      %v1831 = vadd.f32 %v1818, %v1821
      %v1832 = vmul.f32 %v1824, 0.25
      %v1833 = vmul.f32 %v1825, 0.25
      %v1834 = vmul.f32 %v1826, 0.25
      %v1835 = vmul.f32 %v1827, 0.25
      %v1836 = vmul.f32 %v1828, 0.25
      %v1837 = vmul.f32 %v1829, 0.25
      %v1838 = vmul.f32 %v1830, 0.25
      %v1839 = vmul.f32 %v1831, 0.25
      %v1840 = vld [vmem:[%s2] sm:$0x1]
      %v1842 = vlaneseq
      %v1843 = vshrl.u32 %v1842, 7
      %v1844 = vsub.s32 0, %v1843
      %v1845 = vrot.slane %v1840, %v1844
      %v1847 = vadd.f32 %v1832, %v1845
      %v1848 = vadd.f32 %v1833, %v1845
      %v1849 = vadd.f32 %v1834, %v1845
      %v1850 = vadd.f32 %v1835, %v1845
      %v1851 = vadd.f32 %v1836, %v1845
      %v1852 = vadd.f32 %v1837, %v1845
      %v1853 = vadd.f32 %v1838, %v1845
      %v1854 = vadd.f32 %v1839, %v1845
      %vm1855 = vcmp.gt.f32.partialorder %v1847, 0.0
      %vm1856 = vcmp.gt.f32.partialorder %v1848, 0.0
      %vm1857 = vcmp.gt.f32.partialorder %v1849, 0.0
      %vm1858 = vcmp.gt.f32.partialorder %v1850, 0.0
      %vm1859 = vcmp.gt.f32.partialorder %v1851, 0.0
      %vm1860 = vcmp.gt.f32.partialorder %v1852, 0.0
      %vm1861 = vcmp.gt.f32.partialorder %v1853, 0.0
      %vm1862 = vcmp.gt.f32.partialorder %v1854, 0.0
      %v1863 = vmul.f32 %v1847, 0.2
      %v1864 = vmul.f32 %v1848, 0.2
      %v1865 = vmul.f32 %v1849, 0.2
      %v1866 = vmul.f32 %v1850, 0.2
      %v1867 = vmul.f32 %v1851, 0.2
      %v1868 = vmul.f32 %v1852, 0.2
      %v1869 = vmul.f32 %v1853, 0.2
      %v1870 = vmul.f32 %v1854, 0.2
      %v1871 = vsel %vm1855, %v1847, %v1863
      %v1872 = vsel %vm1856, %v1848, %v1864
      %v1873 = vsel %vm1857, %v1849, %v1865
      %v1874 = vsel %vm1858, %v1850, %v1866
      %v1875 = vsel %vm1859, %v1851, %v1867
      %v1876 = vsel %vm1860, %v1852, %v1868
      %v1877 = vsel %vm1861, %v1853, %v1869
      %v1878 = vsel %vm1862, %v1854, %v1870
      %vm1879 = vcmask 27648
      %1880 = vst.msk [vmem:[#allocation3] sm:$0xf] %vm1879, 0
      %vm1881 = vcmask 24576
      %1882 = vst.msk [vmem:[#allocation3 + $0x4] sm:$0x1] %vm1881, 0
      %1883 = vst.msk [vmem:[#allocation3 + $0x8] sm:$0xf] %vm1879, 0
      %1884 = vst.msk [vmem:[#allocation3 + $0xc] sm:$0x1] %vm1881, 0
      %1885 = vst.msk [vmem:[#allocation3 + $0x10] sm:$0xf] %vm1879, 0
      %1886 = vst.msk [vmem:[#allocation3 + $0x14] sm:$0x1] %vm1881, 0
      %1887 = vst.msk [vmem:[#allocation3 + $0x18] sm:$0xf] %vm1879, 0
      %1888 = vst.msk [vmem:[#allocation3 + $0x1c] sm:$0x1] %vm1881, 0
      %1889 = vst.msk [vmem:[#allocation3 + $0x20] sm:$0xf] %vm1879, 0
      %1890 = vst.msk [vmem:[#allocation3 + $0x24] sm:$0x1] %vm1881, 0
      %1891 = vst.msk [vmem:[#allocation3 + $0x28] sm:$0xf] %vm1879, 0
      %1892 = vst.msk [vmem:[#allocation3 + $0x2c] sm:$0x1] %vm1881, 0
      %1893 = vst.msk [vmem:[#allocation3 + $0x30] sm:$0xf] %vm1879, 0
      %1894 = vst.msk [vmem:[#allocation3 + $0x34] sm:$0x1] %vm1881, 0
      %1895 = vst.msk [vmem:[#allocation3 + $0x38] sm:$0xf] %vm1879, 0
      %1896 = vst.msk [vmem:[#allocation3 + $0x3c] sm:$0x1] %vm1881, 0
      %1897 = vst.msk [vmem:[#allocation3 + $0x40] sm:$0xf] %vm1879, 0
      %1898 = vst.msk [vmem:[#allocation3 + $0x44] sm:$0x1] %vm1881, 0
      %1899 = vst.msk [vmem:[#allocation3 + $0x48] sm:$0xf] %vm1879, 0
      %1900 = vst.msk [vmem:[#allocation3 + $0x4c] sm:$0x1] %vm1881, 0
      %v1901 = vpack.c.bf16 %v1871, %v1871
      %v1902 = vpack.c.bf16 %v1872, %v1872
      %v1903 = vpack.c.bf16 %v1873, %v1873
      %v1904 = vpack.c.bf16 %v1874, %v1874
      %v1905 = vpack.c.bf16 %v1875, %v1875
      %v1906 = vpack.c.bf16 %v1876, %v1876
      %v1907 = vpack.c.bf16 %v1877, %v1877
      %v1908 = vpack.c.bf16 %v1878, %v1878
      %v1917 = vunpack.c.l.b16 %v1901
      %v1918 = vunpack.c.l.b16 %v1902
      %v1919 = vunpack.c.l.b16 %v1903
      %v1920 = vunpack.c.l.b16 %v1904
      %v1921 = vunpack.c.l.b16 %v1905
      %v1922 = vunpack.c.l.b16 %v1906
      %v1923 = vunpack.c.l.b16 %v1907
      %v1924 = vunpack.c.l.b16 %v1908
      %v1925 = vpack.c.b16 %v1917, %v1917
      %v1926 = vpack.c.b16 %v1918, %v1918
      %v1927 = vpack.c.b16 %v1919, %v1919
      %v1928 = vpack.c.b16 %v1920, %v1920
      %v1929 = vpack.c.b16 %v1921, %v1921
      %v1930 = vpack.c.b16 %v1922, %v1922
      %v1931 = vpack.c.b16 %v1923, %v1923
      %v1932 = vpack.c.b16 %v1924, %v1924
      %v1934 = vshrl.u32 %v1925, 16
      %v1936 = vrot.slane %v1934, 7
      %v1937 = vshll.u32 %v1925, 16
      %v1939 = vor.u32 %v1936, %v1937
      %v1940 = vrot.slane %v1936, 4
      %v1942 = vshrl.u32 %v1926, 16
      %v1944 = vrot.slane %v1942, 7
      %v1945 = vshll.u32 %v1926, 16
      %v1947 = vor.u32 %v1944, %v1945
      %v1948 = vrot.slane %v1944, 4
      %v1950 = vshrl.u32 %v1927, 16
      %v1952 = vrot.slane %v1950, 7
      %v1953 = vshll.u32 %v1927, 16
      %v1955 = vor.u32 %v1952, %v1953
      %v1956 = vrot.slane %v1952, 4
      %v1958 = vshrl.u32 %v1928, 16
      %v1960 = vrot.slane %v1958, 7
      %v1961 = vshll.u32 %v1928, 16
      %v1963 = vor.u32 %v1960, %v1961
      %v1964 = vrot.slane %v1960, 4
      %v1966 = vshrl.u32 %v1929, 16
      %v1968 = vrot.slane %v1966, 7
      %v1969 = vshll.u32 %v1929, 16
      %v1971 = vor.u32 %v1968, %v1969
      %v1972 = vrot.slane %v1968, 4
      %v1974 = vshrl.u32 %v1930, 16
      %v1976 = vrot.slane %v1974, 7
      %v1977 = vshll.u32 %v1930, 16
      %v1979 = vor.u32 %v1976, %v1977
      %v1980 = vrot.slane %v1976, 4
      %v1982 = vshrl.u32 %v1931, 16
      %v1984 = vrot.slane %v1982, 7
      %v1985 = vshll.u32 %v1931, 16
      %v1987 = vor.u32 %v1984, %v1985
      %v1988 = vrot.slane %v1984, 4
      %v1990 = vshrl.u32 %v1932, 16
      %v1992 = vrot.slane %v1990, 7
      %v1993 = vshll.u32 %v1932, 16
      %v1995 = vor.u32 %v1992, %v1993
      %v1996 = vrot.slane %v1992, 4
      %s2013 = scalar_lea.vmem [#allocation3], 8
      %vm2014 = vcmask 27648
      %vm2015 = vmand %vm2014, %vm764
      %v2016 = vld [vmem:[%s2013] sm:$0xf]
      %v2017 = vsel %vm2015, %v1939, %v2016
      %2018 = vst [vmem:[%s2013] sm:$0xf] %v2017
      %vm2019 = vcmask 24576
      %vm2020 = vmand %vm2019, %vm770
      %v2021 = vld [vmem:[%s2013 + $0x4] sm:$0x1]
      %v2022 = vsel %vm2020, %v1940, %v2021
      %2023 = vst [vmem:[%s2013 + $0x4] sm:$0x1] %v2022
      %v2024 = vld [vmem:[%s2013 + $0x8] sm:$0xf]
      %v2025 = vsel %vm2015, %v1947, %v2024
      %2026 = vst [vmem:[%s2013 + $0x8] sm:$0xf] %v2025
      %v2027 = vld [vmem:[%s2013 + $0xc] sm:$0x1]
      %v2028 = vsel %vm2020, %v1948, %v2027
      %2029 = vst [vmem:[%s2013 + $0xc] sm:$0x1] %v2028
      %v2030 = vld [vmem:[%s2013 + $0x10] sm:$0xf]
      %v2031 = vsel %vm2015, %v1955, %v2030
      %2032 = vst [vmem:[%s2013 + $0x10] sm:$0xf] %v2031
      %v2033 = vld [vmem:[%s2013 + $0x14] sm:$0x1]
      %v2034 = vsel %vm2020, %v1956, %v2033
      %2035 = vst [vmem:[%s2013 + $0x14] sm:$0x1] %v2034
      %v2036 = vld [vmem:[%s2013 + $0x18] sm:$0xf]
      %v2037 = vsel %vm2015, %v1963, %v2036
      %2038 = vst [vmem:[%s2013 + $0x18] sm:$0xf] %v2037
      %v2039 = vld [vmem:[%s2013 + $0x1c] sm:$0x1]
      %v2040 = vsel %vm2020, %v1964, %v2039
      %2041 = vst [vmem:[%s2013 + $0x1c] sm:$0x1] %v2040
      %v2042 = vld [vmem:[%s2013 + $0x20] sm:$0xf]
      %v2043 = vsel %vm2015, %v1971, %v2042
      %2044 = vst [vmem:[%s2013 + $0x20] sm:$0xf] %v2043
      %v2045 = vld [vmem:[%s2013 + $0x24] sm:$0x1]
      %v2046 = vsel %vm2020, %v1972, %v2045
      %2047 = vst [vmem:[%s2013 + $0x24] sm:$0x1] %v2046
      %v2048 = vld [vmem:[%s2013 + $0x28] sm:$0xf]
      %v2049 = vsel %vm2015, %v1979, %v2048
      %2050 = vst [vmem:[%s2013 + $0x28] sm:$0xf] %v2049
      %v2051 = vld [vmem:[%s2013 + $0x2c] sm:$0x1]
      %v2052 = vsel %vm2020, %v1980, %v2051
      %2053 = vst [vmem:[%s2013 + $0x2c] sm:$0x1] %v2052
      %v2054 = vld [vmem:[%s2013 + $0x30] sm:$0xf]
      %v2055 = vsel %vm2015, %v1987, %v2054
      %2056 = vst [vmem:[%s2013 + $0x30] sm:$0xf] %v2055
      %v2057 = vld [vmem:[%s2013 + $0x34] sm:$0x1]
      %v2058 = vsel %vm2020, %v1988, %v2057
      %2059 = vst [vmem:[%s2013 + $0x34] sm:$0x1] %v2058
      %v2060 = vld [vmem:[%s2013 + $0x38] sm:$0xf]
      %v2061 = vsel %vm2015, %v1995, %v2060
      %2062 = vst [vmem:[%s2013 + $0x38] sm:$0xf] %v2061
      %v2063 = vld [vmem:[%s2013 + $0x3c] sm:$0x1]
      %v2064 = vsel %vm2020, %v1996, %v2063
      %2065 = vst [vmem:[%s2013 + $0x3c] sm:$0x1] %v2064
      %v2066 = vld [vmem:[#allocation3] sm:$0xf]
      %v2067 = vld [vmem:[#allocation3 + $0x4] sm:$0x1]
      %v2068 = vld [vmem:[#allocation3 + $0x8] sm:$0xf]
      %v2069 = vld [vmem:[#allocation3 + $0xc] sm:$0x1]
      %v2070 = vld [vmem:[#allocation3 + $0x10] sm:$0xf]
      %v2071 = vld [vmem:[#allocation3 + $0x14] sm:$0x1]
      %v2072 = vld [vmem:[#allocation3 + $0x18] sm:$0xf]
      %v2073 = vld [vmem:[#allocation3 + $0x1c] sm:$0x1]
      %v2074 = vld [vmem:[#allocation3 + $0x20] sm:$0xf]
      %v2075 = vld [vmem:[#allocation3 + $0x24] sm:$0x1]
      %v2076 = vld [vmem:[#allocation3 + $0x28] sm:$0xf]
      %v2077 = vld [vmem:[#allocation3 + $0x2c] sm:$0x1]
      %v2078 = vld [vmem:[#allocation3 + $0x30] sm:$0xf]
      %v2079 = vld [vmem:[#allocation3 + $0x34] sm:$0x1]
      %v2080 = vld [vmem:[#allocation3 + $0x38] sm:$0xf]
      %v2081 = vld [vmem:[#allocation3 + $0x3c] sm:$0x1]
      %v2082 = vld [vmem:[#allocation3 + $0x40] sm:$0xf]
      %v2083 = vld [vmem:[#allocation3 + $0x44] sm:$0x1]
      %v2084 = vld [vmem:[#allocation3 + $0x48] sm:$0xf]
      %v2085 = vld [vmem:[#allocation3 + $0x4c] sm:$0x1]
      %v2087 = vshrl.u32 %v2066, 16
      %v2089 = vrot.slane %v2087, 4
      %v2090 = vshll.u32 %v2066, 16
      %v2092 = vrot.slane %v2090, 5
      %v2093 = vor.u32 %v2089, %v2092
      %v2094 = vrot.slane %v2093, 4
      %v2096 = vshll.u32 %v2067, 16
      %v2098 = vrot.slane %v2096, 5
      %v2099 = vsel %vm903, %v2094, %v2098
      %v2101 = vshrl.u32 %v2068, 16
      %v2103 = vrot.slane %v2101, 4
      %v2104 = vshll.u32 %v2068, 16
      %v2106 = vrot.slane %v2104, 5
      %v2107 = vor.u32 %v2103, %v2106
      %v2108 = vrot.slane %v2107, 4
      %v2110 = vshll.u32 %v2069, 16
      %v2112 = vrot.slane %v2110, 5
      %v2113 = vsel %vm903, %v2108, %v2112
      %v2115 = vshrl.u32 %v2070, 16
      %v2117 = vrot.slane %v2115, 4
      %v2118 = vshll.u32 %v2070, 16
      %v2120 = vrot.slane %v2118, 5
      %v2121 = vor.u32 %v2117, %v2120
      %v2122 = vrot.slane %v2121, 4
      %v2124 = vshll.u32 %v2071, 16
      %v2126 = vrot.slane %v2124, 5
      %v2127 = vsel %vm903, %v2122, %v2126
      %v2129 = vshrl.u32 %v2072, 16
      %v2131 = vrot.slane %v2129, 4
      %v2132 = vshll.u32 %v2072, 16
      %v2134 = vrot.slane %v2132, 5
      %v2135 = vor.u32 %v2131, %v2134
      %v2136 = vrot.slane %v2135, 4
      %v2138 = vshll.u32 %v2073, 16
      %v2140 = vrot.slane %v2138, 5
      %v2141 = vsel %vm903, %v2136, %v2140
      %v2143 = vshrl.u32 %v2074, 16
      %v2145 = vrot.slane %v2143, 4
      %v2146 = vshll.u32 %v2074, 16
      %v2148 = vrot.slane %v2146, 5
      %v2149 = vor.u32 %v2145, %v2148
      %v2150 = vrot.slane %v2149, 4
      %v2152 = vshll.u32 %v2075, 16
      %v2154 = vrot.slane %v2152, 5
      %v2155 = vsel %vm903, %v2150, %v2154
      %v2157 = vshrl.u32 %v2076, 16
      %v2159 = vrot.slane %v2157, 4
      %v2160 = vshll.u32 %v2076, 16
      %v2162 = vrot.slane %v2160, 5
      %v2163 = vor.u32 %v2159, %v2162
      %v2164 = vrot.slane %v2163, 4
      %v2166 = vshll.u32 %v2077, 16
      %v2168 = vrot.slane %v2166, 5
      %v2169 = vsel %vm903, %v2164, %v2168
      %v2171 = vshrl.u32 %v2078, 16
      %v2173 = vrot.slane %v2171, 4
      %v2174 = vshll.u32 %v2078, 16
      %v2176 = vrot.slane %v2174, 5
      %v2177 = vor.u32 %v2173, %v2176
      %v2178 = vrot.slane %v2177, 4
      %v2180 = vshll.u32 %v2079, 16
      %v2182 = vrot.slane %v2180, 5
      %v2183 = vsel %vm903, %v2178, %v2182
      %v2185 = vshrl.u32 %v2080, 16
      %v2187 = vrot.slane %v2185, 4
      %v2188 = vshll.u32 %v2080, 16
      %v2190 = vrot.slane %v2188, 5
      %v2191 = vor.u32 %v2187, %v2190
      %v2192 = vrot.slane %v2191, 4
      %v2194 = vshll.u32 %v2081, 16
      %v2196 = vrot.slane %v2194, 5
      %v2197 = vsel %vm903, %v2192, %v2196
      %v2214 = vrot.slane %v2066, 5
      %v2215 = vrot.slane %v2214, 4
      %v2216 = vrot.slane %v2067, 5
      %v2217 = vsel %vm1162, %v2215, %v2216
      %v2218 = vrot.slane %v2068, 5
      %v2219 = vrot.slane %v2218, 4
      %v2220 = vrot.slane %v2069, 5
      %v2221 = vsel %vm1162, %v2219, %v2220
      %v2222 = vrot.slane %v2070, 5
      %v2223 = vrot.slane %v2222, 4
      %v2224 = vrot.slane %v2071, 5
      %v2225 = vsel %vm1162, %v2223, %v2224
      %v2226 = vrot.slane %v2072, 5
      %v2227 = vrot.slane %v2226, 4
      %v2228 = vrot.slane %v2073, 5
      %v2229 = vsel %vm1162, %v2227, %v2228
      %v2230 = vrot.slane %v2074, 5
      %v2231 = vrot.slane %v2230, 4
      %v2232 = vrot.slane %v2075, 5
      %v2233 = vsel %vm1162, %v2231, %v2232
      %v2234 = vrot.slane %v2076, 5
      %v2235 = vrot.slane %v2234, 4
      %v2236 = vrot.slane %v2077, 5
      %v2237 = vsel %vm1162, %v2235, %v2236
      %v2238 = vrot.slane %v2078, 5
      %v2239 = vrot.slane %v2238, 4
      %v2240 = vrot.slane %v2079, 5
      %v2241 = vsel %vm1162, %v2239, %v2240
      %v2242 = vrot.slane %v2080, 5
      %v2243 = vrot.slane %v2242, 4
      %v2244 = vrot.slane %v2081, 5
      %v2245 = vsel %vm1162, %v2243, %v2244
      %v2247 = vshrl.u32 %v2082, 16
      %v2249 = vrot.slane %v2247, 4
      %v2250 = vshll.u32 %v2082, 16
      %v2252 = vrot.slane %v2250, 5
      %v2253 = vor.u32 %v2249, %v2252
      %v2254 = vrot.slane %v2253, 4
      %v2256 = vshll.u32 %v2083, 16
      %v2258 = vrot.slane %v2256, 5
      %v2259 = vsel %vm903, %v2254, %v2258
      %v2262 = vrot.slane %v2082, 5
      %v2263 = vrot.slane %v2262, 4
      %v2264 = vrot.slane %v2083, 5
      %v2265 = vsel %vm1162, %v2263, %v2264
      %v2267 = vshrl.u32 %v2084, 16
      %v2269 = vrot.slane %v2267, 4
      %v2270 = vshll.u32 %v2084, 16
      %v2272 = vrot.slane %v2270, 5
      %v2273 = vor.u32 %v2269, %v2272
      %v2274 = vrot.slane %v2273, 4
      %v2276 = vshll.u32 %v2085, 16
      %v2278 = vrot.slane %v2276, 5
      %v2279 = vsel %vm903, %v2274, %v2278
      %v2282 = vrot.slane %v2084, 5
      %v2283 = vrot.slane %v2282, 4
      %v2284 = vrot.slane %v2085, 5
      %v2285 = vsel %vm1162, %v2283, %v2284
      %v2286 = vunpack.c.l.b16 %v2066
      %v2287 = vunpack.c.l.b16 %v2068
      %v2288 = vunpack.c.l.b16 %v2070
      %v2289 = vunpack.c.l.b16 %v2072
      %v2290 = vunpack.c.l.b16 %v2074
      %v2291 = vunpack.c.l.b16 %v2076
      %v2292 = vunpack.c.l.b16 %v2078
      %v2293 = vunpack.c.l.b16 %v2080
      %v2294 = vpack.c.b16 %v2287, %v2286
      %v2295 = vpack.c.b16 %v2289, %v2288
      %v2296 = vpack.c.b16 %v2291, %v2290
      %v2297 = vpack.c.b16 %v2293, %v2292
      %v2298 = vunpack.c.l.b16 %v2099
      %v2299 = vunpack.c.l.b16 %v2113
      %v2300 = vunpack.c.l.b16 %v2127
      %v2301 = vunpack.c.l.b16 %v2141
      %v2302 = vunpack.c.l.b16 %v2155
      %v2303 = vunpack.c.l.b16 %v2169
      %v2304 = vunpack.c.l.b16 %v2183
      %v2305 = vunpack.c.l.b16 %v2197
      %v2306 = vpack.c.b16 %v2299, %v2298
      %v2307 = vpack.c.b16 %v2301, %v2300
      %v2308 = vpack.c.b16 %v2303, %v2302
      %v2309 = vpack.c.b16 %v2305, %v2304
      %2310 = vrot.lane.b32.xlu0 %v2306, 4
      %v2311 = vpop.permute.xlu0 %2310
      %2312 = vrot.lane.b32.xlu0 %v2307, 4
      %v2313 = vpop.permute.xlu0 %2312
      %2314 = vrot.lane.b32.xlu0 %v2308, 4
      %v2315 = vpop.permute.xlu0 %2314
      %2316 = vrot.lane.b32.xlu0 %v2309, 4
      %v2317 = vpop.permute.xlu0 %2316
      %v2318 = vunpack.c.l.b16 %v2217
      %v2319 = vunpack.c.l.b16 %v2221
      %v2320 = vunpack.c.l.b16 %v2225
      %v2321 = vunpack.c.l.b16 %v2229
      %v2322 = vunpack.c.l.b16 %v2233
      %v2323 = vunpack.c.l.b16 %v2237
      %v2324 = vunpack.c.l.b16 %v2241
      %v2325 = vunpack.c.l.b16 %v2245
      %v2326 = vpack.c.b16 %v2319, %v2318
      %v2327 = vpack.c.b16 %v2321, %v2320
      %v2328 = vpack.c.b16 %v2323, %v2322
      %v2329 = vpack.c.b16 %v2325, %v2324
      %2330 = vrot.lane.b32.xlu0 %v2326, 8
      %v2331 = vpop.permute.xlu0 %2330
      %2332 = vrot.lane.b32.xlu0 %v2327, 8
      %v2333 = vpop.permute.xlu0 %2332
      %2334 = vrot.lane.b32.xlu0 %v2328, 8
      %v2335 = vpop.permute.xlu0 %2334
      %2336 = vrot.lane.b32.xlu0 %v2329, 8
      %v2337 = vpop.permute.xlu0 %2336
      %v2338 = vunpack.c.l.b16 %v2082
      %v2339 = vpack.c.b16 %v2288, %v2287
      %v2340 = vpack.c.b16 %v2290, %v2289
      %v2341 = vpack.c.b16 %v2292, %v2291
      %v2342 = vpack.c.b16 %v2338, %v2293
      %2343 = vrot.lane.b32.xlu0 %v2339, 12
      %v2344 = vpop.permute.xlu0 %2343
      %2345 = vrot.lane.b32.xlu0 %v2340, 12
      %v2346 = vpop.permute.xlu0 %2345
      %2347 = vrot.lane.b32.xlu0 %v2341, 12
      %v2348 = vpop.permute.xlu0 %2347
      %2349 = vrot.lane.b32.xlu0 %v2342, 12
      %v2350 = vpop.permute.xlu0 %2349
      %v2351 = vunpack.c.l.b16 %v2259
      %v2352 = vpack.c.b16 %v2300, %v2299
      %v2353 = vpack.c.b16 %v2302, %v2301
      %v2354 = vpack.c.b16 %v2304, %v2303
      %v2355 = vpack.c.b16 %v2351, %v2305
      %2356 = vrot.lane.b32.xlu0 %v2352, 16
      %v2357 = vpop.permute.xlu0 %2356
      %2358 = vrot.lane.b32.xlu0 %v2353, 16
      %v2359 = vpop.permute.xlu0 %2358
      %2360 = vrot.lane.b32.xlu0 %v2354, 16
      %v2361 = vpop.permute.xlu0 %2360
      %2362 = vrot.lane.b32.xlu0 %v2355, 16
      %v2363 = vpop.permute.xlu0 %2362
      %v2364 = vunpack.c.l.b16 %v2265
      %v2365 = vpack.c.b16 %v2320, %v2319
      %v2366 = vpack.c.b16 %v2322, %v2321
      %v2367 = vpack.c.b16 %v2324, %v2323
      %v2368 = vpack.c.b16 %v2364, %v2325
      %2369 = vrot.lane.b32.xlu0 %v2365, 20
      %v2370 = vpop.permute.xlu0 %2369
      %2371 = vrot.lane.b32.xlu0 %v2366, 20
      %v2372 = vpop.permute.xlu0 %2371
      %2373 = vrot.lane.b32.xlu0 %v2367, 20
      %v2374 = vpop.permute.xlu0 %2373
      %2375 = vrot.lane.b32.xlu0 %v2368, 20
      %v2376 = vpop.permute.xlu0 %2375
      %v2377 = vunpack.c.l.b16 %v2084
      %v2378 = vpack.c.b16 %v2377, %v2338
      %2379 = vrot.lane.b32.xlu0 %v2295, 24
      %v2380 = vpop.permute.xlu0 %2379
      %2381 = vrot.lane.b32.xlu0 %v2296, 24
      %v2382 = vpop.permute.xlu0 %2381
      %2383 = vrot.lane.b32.xlu0 %v2297, 24
      %v2384 = vpop.permute.xlu0 %2383
      %2385 = vrot.lane.b32.xlu0 %v2378, 24
      %v2386 = vpop.permute.xlu0 %2385
      %v2387 = vunpack.c.l.b16 %v2279
      %v2388 = vpack.c.b16 %v2387, %v2351
      %2389 = vrot.lane.b32.xlu0 %v2307, 28
      %v2390 = vpop.permute.xlu0 %2389
      %2391 = vrot.lane.b32.xlu0 %v2308, 28
      %v2392 = vpop.permute.xlu0 %2391
      %2393 = vrot.lane.b32.xlu0 %v2309, 28
      %v2394 = vpop.permute.xlu0 %2393
      %2395 = vrot.lane.b32.xlu0 %v2388, 28
      %v2396 = vpop.permute.xlu0 %2395
      %v2397 = vunpack.c.l.b16 %v2285
      %v2398 = vpack.c.b16 %v2397, %v2364
      %2399 = vrot.lane.b32.xlu0 %v2327, 32
      %v2400 = vpop.permute.xlu0 %2399
      %2401 = vrot.lane.b32.xlu0 %v2328, 32
      %v2402 = vpop.permute.xlu0 %2401
      %2403 = vrot.lane.b32.xlu0 %v2329, 32
      %v2404 = vpop.permute.xlu0 %2403
      %2405 = vrot.lane.b32.xlu0 %v2398, 32
      %v2406 = vpop.permute.xlu0 %2405
      %v2409 = vsel %vm370, %v2294, %v2311
      %v2412 = vsel %vm370, %v2295, %v2313
      %v2415 = vsel %vm370, %v2296, %v2315
      %v2418 = vsel %vm370, %v2297, %v2317
      %v2420 = vsel %vm1540, %v2409, %v2331
      %v2422 = vsel %vm1540, %v2412, %v2333
      %v2424 = vsel %vm1540, %v2415, %v2335
      %v2426 = vsel %vm1540, %v2418, %v2337
      %v2428 = vsel %vm1549, %v2420, %v2344
      %v2430 = vsel %vm1549, %v2422, %v2346
      %v2432 = vsel %vm1549, %v2424, %v2348
      %v2434 = vsel %vm1549, %v2426, %v2350
      %v2436 = vsel %vm1566, %v2428, %v2357
      %v2438 = vsel %vm1566, %v2430, %v2359
      %v2440 = vsel %vm1566, %v2432, %v2361
      %v2442 = vsel %vm1566, %v2434, %v2363
      %v2444 = vsel %vm1583, %v2436, %v2370
      %v2446 = vsel %vm1583, %v2438, %v2372
      %v2448 = vsel %vm1583, %v2440, %v2374
      %v2450 = vsel %vm1583, %v2442, %v2376
      %v2452 = vsel %vm1600, %v2444, %v2380
      %v2454 = vsel %vm1600, %v2446, %v2382
      %v2456 = vsel %vm1600, %v2448, %v2384
      %v2458 = vsel %vm1600, %v2450, %v2386
      %v2460 = vsel %vm1609, %v2452, %v2390
      %v2462 = vsel %vm1609, %v2454, %v2392
      %v2464 = vsel %vm1609, %v2456, %v2394
      %v2466 = vsel %vm1609, %v2458, %v2396
      %v2468 = vsel %vm1626, %v2460, %v2400
      %v2470 = vsel %vm1626, %v2462, %v2402
      %v2472 = vsel %vm1626, %v2464, %v2404
      %v2474 = vsel %vm1626, %v2466, %v2406
      %v2475 = vld [vmem:[%s3] sm:$0xf]
      %v2476 = vld [vmem:[%s3 + $0x4] sm:$0xf]
      %v2477 = vld [vmem:[%s3 + $0x8] sm:$0xf]
      %v2478 = vld [vmem:[%s3 + $0xc] sm:$0xf]
      %v2479 = vld [vmem:[%s3 + $0x10] sm:$0x3]
      %v2480 = vld [vmem:[%s4] sm:$0x1]
      %v2482 = vlaneseq
      %v2483 = vshrl.u32 %v2482, 7
      %v2484 = vsub.s32 0, %v2483
      %v2485 = vrot.slane %v2480, %v2484
      %v2492 = vunpack.c.l.b16 %v2475
      %v2493 = vunpack.c.l.b16 %v2476
      %v2494 = vunpack.c.l.b16 %v2477
      %v2495 = vunpack.c.l.b16 %v2478
      %v2496 = vunpack.c.l.b16 %v2479
      %v2497 = vpack.c.b16 %v2493, %v2492
      %v2498 = vpack.c.b16 %v2495, %v2494
      %v2499 = vpack.c.b16 %v2496, %v2496
      %v2502 = vsel %vm1643, %v2468, 0
      %v2504 = vsel %vm1643, %v2470, 0
      %v2506 = vsel %vm1643, %v2472, 0
      %v2508 = vsel %vm1643, %v2474, 0
      %v2511 = vsel %vm383, %v2499, 0
      %2513 = vmatprep.subr.bf16.mxu0 0
      %2514 = vmatpush1.bf16.msra.mxu0 %v2497
      %2515 = vmatprep.subr.bf16.mxu0 0
      %2516 = vmatpush1.bf16.msra.mxu0 %v2498
      %2517 = vmatprep.subr.bf16.mxu0 0
      %2518 = vmatpush1.bf16.msra.mxu0 %v2511
      %2519 = vmatprep.subr.bf16.mxu0 0
      %2520 = vmatpush1.bf16.msra.mxu0 0
      %2521 = vmatprep.subr.bf16.mxu0 0
      %2522 = vmatpush1.bf16.msra.mxu0 0
      %2523 = vmatprep.subr.bf16.mxu0 0
      %2524 = vmatpush1.bf16.msra.mxu0 0
      %2525 = vmatprep.subr.bf16.mxu0 0
      %2526 = vmatpush1.bf16.msra.mxu0 0
      %2527 = vmatprep.subr.bf16.mxu0 0
      %2528 = vmatpush1.bf16.msra.mxu0 0
      %2529 = vmatprep.subr.bf16.mxu0 0
      %2530 = vmatpush1.bf16.msra.mxu0 0
      %2531 = vmatprep.subr.bf16.mxu0 0
      %2532 = vmatpush1.bf16.msra.mxu0 0
      %2533 = vmatprep.subr.bf16.mxu0 0
      %2534 = vmatpush1.bf16.msra.mxu0 0
      %2535 = vmatprep.subr.bf16.mxu0 0
      %2536 = vmatpush1.bf16.msra.mxu0 0
      %2537 = vmatprep.subr.bf16.mxu0 0
      %2538 = vmatpush1.bf16.msra.mxu0 0
      %2539 = vmatprep.subr.bf16.mxu0 0
      %2540 = vmatpush1.bf16.msra.mxu0 0
      %2541 = vmatprep.subr.bf16.mxu0 0
      %2542 = vmatpush1.bf16.msra.mxu0 0
      %2543 = vmatprep.subr.bf16.mxu0 0
      %2544 = vmatpush1.bf16.msra.mxu0 0
      %2545 = vmatprep.mubr.bf16.mxu0 0
      %2546 = vmatmul.mubr.bf16.gmra.mrb[0].mxu0 %v2502
      %v2547 = vpop.f32.mrb[0].mxu0
      %v2548 = vadd.f32 %v2485, %v2547
      %v2549 = vpop.f32.mrb[0].mxu0
      %v2550 = vpop.f32.mrb[0].mxu0
      %v2551 = vadd.f32 %v2485, %v2550
      %v2552 = vpop.f32.mrb[0].mxu0
      %2553 = vmatprep.mubr.bf16.mxu0 0
      %2554 = vmatmul.mubr.bf16.gmra.mrb[0].mxu0 %v2504
      %v2555 = vpop.f32.mrb[0].mxu0
      %v2556 = vadd.f32 %v2485, %v2555
      %v2557 = vpop.f32.mrb[0].mxu0
      %v2558 = vpop.f32.mrb[0].mxu0
      %v2559 = vadd.f32 %v2485, %v2558
      %v2560 = vpop.f32.mrb[0].mxu0
      %2561 = vmatprep.mubr.bf16.mxu0 0
      %2562 = vmatmul.mubr.bf16.gmra.mrb[0].mxu0 %v2506
      %v2563 = vpop.f32.mrb[0].mxu0
      %v2564 = vadd.f32 %v2485, %v2563
      %v2565 = vpop.f32.mrb[0].mxu0
      %v2566 = vpop.f32.mrb[0].mxu0
      %v2567 = vadd.f32 %v2485, %v2566
      %v2568 = vpop.f32.mrb[0].mxu0
      %2569 = vmatprep.mubr.bf16.mxu0 0
      %2570 = vmatmul.mubr.bf16.gmra.mrb[0].mxu0 %v2508
      %v2571 = vpop.f32.mrb[0].mxu0
      %v2572 = vadd.f32 %v2485, %v2571
      %v2573 = vpop.f32.mrb[0].mxu0
      %v2574 = vpop.f32.mrb[0].mxu0
      %v2575 = vadd.f32 %v2485, %v2574
      %v2576 = vpop.f32.mrb[0].mxu0
      %2577 = vdwg.mxu0
      %v2578 = vadd.f32 %v2548, %v422
      %v2579 = vadd.f32 %v2551, %v425
      %v2580 = vadd.f32 %v2556, %v430
      %v2581 = vadd.f32 %v2559, %v433
      %v2582 = vadd.f32 %v2564, %v438
      %v2583 = vadd.f32 %v2567, %v441
      %v2584 = vadd.f32 %v2572, %v446
      %v2585 = vadd.f32 %v2575, %v449
      %v2586 = vmul.f32 %v2578, 0.70710677
      %v2587 = vmul.f32 %v2579, 0.70710677
      %v2588 = vmul.f32 %v2580, 0.70710677
      %v2589 = vmul.f32 %v2581, 0.70710677
      %v2590 = vmul.f32 %v2582, 0.70710677
      %v2591 = vmul.f32 %v2583, 0.70710677
      %v2592 = vmul.f32 %v2584, 0.70710677
      %v2593 = vmul.f32 %v2585, 0.70710677
      %2594 = vst.msk [vmem:[%s251] sm:$0xff] %vm1540, %v2586
      %2595 = vst.msk [vmem:[%s251 + $0x8] sm:$0xff] %vm1540, %v2587
      %2596 = vst.msk [vmem:[%s251 + $0x10] sm:$0xff] %vm1540, %v2588
      %2597 = vst.msk [vmem:[%s251 + $0x18] sm:$0xff] %vm1540, %v2589
      %2598 = vst.msk [vmem:[%s251 + $0x20] sm:$0xff] %vm1540, %v2590
      %2599 = vst.msk [vmem:[%s251 + $0x28] sm:$0xff] %vm1540, %v2591
      %2600 = vst.msk [vmem:[%s251 + $0x30] sm:$0xff] %vm1540, %v2592
      %2601 = vst.msk [vmem:[%s251 + $0x38] sm:$0xff] %vm1540, %v2593
      %p2602 = scmp.lt.s32.totalorder %s17, 1
      %s2603 = scalar_select %p2602, %s17, 1
      %s2604 = smul.addr %s2603, 8
      %s2605 = smul.addr %s2604, 8
      %s2606 = scalar_lea.vmem %s6, %s2605
      // Predicated region
      $region45: #{tpu_custom_call.1} parent=43 // pred_check
        %p2607 = pneg %p166
      $region46: #{tpu_custom_call.1} parent=43 // pred_check_branch
        %2609 = sbr.rel (%p2607) target = $region48
      $region47: #{tpu_custom_call.1} parent=43 // pred_region
        _
      $region48: #{tpu_custom_call.1} parent=43 // pred_fallthru
        _
    $region44: #{tpu_custom_call.1} parent=5 // pred_fallthru
      _
    %p2610 = scmp.le.s32.totalorder 2, %s12
    // Predicated region
    $region49: #{tpu_custom_call.1} parent=5 // pred_check
      %p2611 = pneg %p2610
    $region50: #{tpu_custom_call.1} parent=5 // pred_check_branch
      %2613 = sbr.rel (%p2611) target = $region52
    $region51: #{tpu_custom_call.1} parent=5 // pred_region
      %s2614 = ssub.s32 %s12, 2
      // Predicated region
      $region53: #{tpu_custom_call.1} parent=51 // pred_check
        %p2615 = pneg %p172
      $region54: #{tpu_custom_call.1} parent=51 // pred_check_branch
        %2617 = sbr.rel (%p2615) target = $region56
      $region55: #{tpu_custom_call.1} parent=51 // pred_region
        %p2618 = scmp.lt.s32.totalorder %s18, 1
        %s2619 = scalar_select %p2618, %s18, 1
        %s2620 = smul.addr %s2619, 8
        %s2621 = smul.addr %s2620, 8
        %s2622 = scalar_lea.vmem %s6, %s2621
      $region56: #{tpu_custom_call.1} parent=51 // pred_fallthru
        _
    $region52: #{tpu_custom_call.1} parent=5 // pred_fallthru
      _
  $region6: #{tpu_custom_call.1} parent=0 // loop_footer
    %s16 = sadd.s32 1, %s12
  $region7: #{tpu_custom_call.1} parent=0 // loop_footer_branch
    %11 = sbr.rel target = $region3
  $region8: #{tpu_custom_call.1} parent=0 // loop_exit
    _

</llo_original>
